<compile_context>
chip_gen: v6e
topology: v6e:2x2x1
jax: 0.10.0
libtpu: 0.0.40
codegen_flags: <defaults>
</compile_context>

<pallas_src>
import jax
import jax.numpy as jnp
from jax import lax
from jax.experimental import pallas as pl
from jax.experimental.pallas import tpu as pltpu


C_PAD = 128                            # lane-dense class dimension (<= 128 classes per select())
_FALLBACK_VMEM_LIMIT = 32 * 1024 * 1024


# ---------------------------------------------------------------------------
# Pallas kernels
# ---------------------------------------------------------------------------
def _feat_classsum_kernel(x_ref, w_ref, y_ref, feats_ref, sums_ref, f2_ref):
    # feats = x @ W once per tile; reuse for |f|^2 and the per-tile class sums.
    feats = jnp.dot(x_ref[...], w_ref[...],
                    preferred_element_type=jnp.float32)              # [tile_n, F] f32
    feats_bf = feats.astype(jnp.bfloat16)
    feats_ref[...] = feats_bf                                        # for the distance kernel
    f2_ref[...] = jnp.sum(feats * feats, axis=-1, keepdims=True)     # [tile_n, 1] f32 (XLU reduce)

    # One-hot built on the fly: [C_PAD, tile_n] from the int32 label row.
    y_row = y_ref[...]                                               # [1, tile_n] int32
    cls = lax.broadcasted_iota(jnp.int32, (C_PAD, y_row.shape[1]), 0)
    oh = (cls == y_row).astype(jnp.bfloat16)                         # [C_PAD, tile_n]
    # Per-tile partial class sums (leading grid dim squeezed out of the ref).
    sums_ref[...] = jnp.dot(oh, feats_bf,
                            preferred_element_type=jnp.float32)      # [C_PAD, F] f32


def _dist_kernel(feats_ref, f2_ref, means_t_ref, dist_ref):
    # dist = |f|^2 - 2 f.m ; per-class constant |m|^2 dropped (ranking is per class column).
    cross = jnp.dot(feats_ref[...], means_t_ref[...],
                    preferred_element_type=jnp.float32)              # [tile_n, C_PAD]
    dist_ref[...] = f2_ref[...] - 2.0 * cross


# ---------------------------------------------------------------------------
# Pallas wrappers
# ---------------------------------------------------------------------------
def _spec(block_shape, index_map, single_buffer=False):
    if single_buffer:
        # Grid-invariant operand: no point double-buffering it.
        return pl.BlockSpec(block_shape, index_map, pipeline_mode=pl.Buffered(1))
    return pl.BlockSpec(block_shape, index_map)


def feats_and_class_sums(x_bf16, w_bf16, y_ids, tile_n, vmem_limit):
    n_pad, d = x_bf16.shape
    f = w_bf16.shape[1]
    n_tiles = n_pad // tile_n
    assert n_pad % tile_n == 0

    def build(single_buffer_w):
        return pl.pallas_call(
            _feat_classsum_kernel,
            out_shape=(
                jax.ShapeDtypeStruct((n_pad, f), jnp.bfloat16),          # feats
                jax.ShapeDtypeStruct((n_tiles, C_PAD, f), jnp.float32),  # per-tile class sums
                jax.ShapeDtypeStruct((n_pad, 1), jnp.float32),           # |f|^2
            ),
            grid=(n_tiles,),
            in_specs=[
                pl.BlockSpec((tile_n, d), lambda i: (i, 0)),
                _spec((d, f), lambda i: (0, 0), single_buffer_w),
                pl.BlockSpec((1, tile_n), lambda i: (0, i)),
            ],
            out_specs=(
                pl.BlockSpec((tile_n, f), lambda i: (i, 0)),
                pl.BlockSpec((None, C_PAD, f), lambda i: (i, 0, 0)),     # distinct block per tile
                pl.BlockSpec((tile_n, 1), lambda i: (i, 0)),
            ),
            compiler_params=pltpu.CompilerParams(
                dimension_semantics=("parallel",),       # no serial accumulator -> both TCs usable
                vmem_limit_bytes=vmem_limit),
        )

    try:
        return build(True)(x_bf16, w_bf16, y_ids)
    except Exception:
        # Fallback: default double buffering if Buffered(1) is rejected by this JAX/libtpu.
        return build(False)(x_bf16, w_bf16, y_ids)


def class_dists(feats_bf16, f2, means_t_bf16, tile_n, vmem_limit):
    n_pad, f = feats_bf16.shape
    c_pad = means_t_bf16.shape[1]
    assert n_pad % tile_n == 0

    def build(single_buffer_m):
        return pl.pallas_call(
            _dist_kernel,
            out_shape=jax.ShapeDtypeStruct((n_pad, c_pad), jnp.float32),
            grid=(n_pad // tile_n,),
            in_specs=[
                pl.BlockSpec((tile_n, f), lambda i: (i, 0)),
                pl.BlockSpec((tile_n, 1), lambda i: (i, 0)),
                _spec((f, c_pad), lambda i: (0, 0), single_buffer_m),
            ],
            out_specs=pl.BlockSpec((tile_n, c_pad), lambda i: (i, 0)),
            compiler_params=pltpu.CompilerParams(
                dimension_semantics=("parallel",),
                vmem_limit_bytes=vmem_limit),
        )

    try:
        return build(True)(feats_bf16, f2, means_t_bf16)
    except Exception:
        return build(False)(feats_bf16, f2, means_t_bf16)


# ---------------------------------------------------------------------------
# Helpers (plain JAX glue around the kernels)
# ---------------------------------------------------------------------------
def _round_up(x, m):
    return ((x + m - 1) // m) * m


def _vmem_limit_bytes():
    # Per-generation budget: ~96 MiB on 128 MiB parts (v5e/v6e), ~48 MiB on v7x (64 MiB).
    cap = 128 * 1024 * 1024
    try:
        cap = int(pltpu.get_tpu_info().vmem_capacity_bytes)
    except Exception:
        pass
    return max(_FALLBACK_VMEM_LIMIT, min((cap * 3) // 4, 96 * 1024 * 1024))


def _pick_tile_n(n_128, d, f, vmem_budget):
    # Largest N tile whose per-step working set fits the VMEM budget.
    tile = 128
    for t in (1024, 512, 256, 128):
        need_a = (2 * t * d * 2          # x tile (bf16, double-buffered)
                  + 2 * d * f * 2        # W (worst case: double-buffered)
                  + 2 * t * f * 2        # feats out (bf16)
                  + 2 * C_PAD * f * 4    # partial class sums out (f32)
                  + 2 * t * 4            # |f|^2 out
                  + 2 * t * 4)           # label row
        need_b = (2 * t * f * 2          # feats in
                  + 2 * f * C_PAD * 2    # means_t
                  + 2 * t * C_PAD * 4    # dist out
                  + 2 * t * 4)           # |f|^2 in
        if max(need_a, need_b) <= int(vmem_budget * 0.9):
            tile = t
            break
    # Single-tile when the whole (128-padded) problem fits: on 1-TC chips a
    # serial multi-step grid is pure overhead.
    return min(tile, n_128)


def _local_labels(y, class_ids_arr):
    # Map global labels -> local class index in [0, C); anything else -> C_PAD sentinel.
    match = y[:, None] == class_ids_arr[None, :]                     # [N, C]
    return jnp.where(match.any(axis=1),
                     jnp.argmax(match, axis=1), C_PAD).astype(jnp.int32)


# ---------------------------------------------------------------------------
# Memory module (faithful port of the PyTorch bookkeeping)
# ---------------------------------------------------------------------------
class Memory:
    def __init__(self, classes, max_size=2000, dynamic=False):
        self.classes = classes
        self.max_size = max_size
        self.dynamic = dynamic
        self.num_classes = len(classes)
        if dynamic:
            assert max_size > self.num_classes > 0
        else:
            self.num_classes = 0
        self._size = None
        self.container = []

    @property
    def size(self):
        if self._size is None:
            self._size = sum([len(item) for item in self.container], 0)
        return self._size

    def __getitem__(self, idx):
        return self.container[idx]

    def select(self, model, dataloader, num_exemplars):
        # Base class `select` is an abstract stub (`pass`); realized here as
        # nearest-class-mean selection with the matmul hot path in Pallas.
        w = jnp.asarray(model, jnp.float32)            # [D, F] linear feature extractor
        x, y, class_ids = dataloader                   # x: [N, D], y: [N] int labels
        x = jnp.asarray(x, jnp.float32)
        y = jnp.asarray(y, jnp.int32)
        class_ids_arr = jnp.asarray(class_ids, jnp.int32)
        N, D = x.shape
        F = int(w.shape[1])
        C = int(class_ids_arr.shape[0])
        assert C <= C_PAD, f"select() supports at most {C_PAD} classes per call"

        vmem_limit = _vmem_limit_bytes()
        n_128 = _round_up(max(N, 128), 128)
        tile_n = _pick_tile_n(n_128, D, F, vmem_limit)
        n_pad = _round_up(n_128, tile_n)               # pad to the tile, not just 128

        # bf16 inputs (MXU-native), f32 accumulation inside the kernels.
        # NOTE: bf16 feature extraction can reorder near-tie exemplar rankings vs f32.
        x_pad = jnp.zeros((n_pad, D), jnp.bfloat16).at[:N].set(x.astype(jnp.bfloat16))
        w_bf = w.astype(jnp.bfloat16)
        y_local = _local_labels(y, class_ids_arr)                               # [N]
        y_pad = jnp.full((1, n_pad), C_PAD, jnp.int32).at[0, :N].set(y_local)   # [1, n_pad]

        feats, partial_sums, f2 = feats_and_class_sums(
            x_pad, w_bf, y_pad, tile_n, vmem_limit)                  # Pallas kernel A
        sums = jnp.sum(partial_sums, axis=0)                         # [C_PAD, F] (tiny XLA reduce)
        counts = jnp.sum((y_pad[0][:, None] == jnp.arange(C_PAD)[None, :])
                         .astype(jnp.float32), axis=0)               # counts from labels, no HBM re-read
        counts = jnp.maximum(counts, 1.0)
        means_t = (sums / counts[:, None]).T.astype(jnp.bfloat16)    # [F, C_PAD]

        dists = class_dists(feats, f2, means_t, tile_n, vmem_limit)  # Pallas kernel B
        dists = dists[:N, :C]
        in_class = y_local[:, None] == jnp.arange(C)[None, :]        # [N, C]
        masked = jnp.where(in_class, dists, jnp.inf)
        # NOTE: classes with fewer than num_exemplars members pick arbitrary
        # out-of-class indices; acceptable since the base-class select() is abstract.
        # TODO(synk): exemplar top-k ranking has no clean Pallas equivalent; done in plain JAX.
        k = min(num_exemplars, N)
        _, idx = lax.top_k(-masked.T, k)                             # [C, k] smallest distances
        sel = jax.device_get(idx)
        return [list(map(int, sel[c])) for c in range(C)]

    def delete(self, indices, num_exemplars):
        return indices[:num_exemplars], indices[num_exemplars:]

    def update(self, model, dataloader, num_classes=-1, num_old_classes=-1,
               dry_run=False):
        assert num_classes > 0 and self.num_classes >= num_old_classes
        if num_old_classes < 0:
            num_old_classes = len(self.container)
        container, deleted_indices = self.container[:num_old_classes], []
        num_exemplars = self.max_size // (num_old_classes + num_classes)
        if self.dynamic:
            num_exemplars = self.max_size // self.num_classes
        elif num_old_classes > 0:
            results = [self.delete(item, num_exemplars) for item in container]
            container, _ = map(list, zip(*results))
        selected_indices = self.select(model, dataloader, num_exemplars)
        container = container + selected_indices
        if not dry_run:
            self.container, self._size = container, None
            if not self.dynamic:
                self.num_classes = num_old_classes + num_classes
        return container

    def forward(self, *args, **kwargs):
        return self.update(*args, **kwargs)

    __call__ = forward


# ---------------------------------------------------------------------------
# Demo / smoke test
# ---------------------------------------------------------------------------
if __name__ == "__main__":
    key = jax.random.PRNGKey(0)
    N, D, F = 256, 128, 128              # samples, input dim, feature dim
    classes = list(range(8))
    mem = Memory(classes=classes, max_size=64, dynamic=False)

    kw, k1, k2, k3, k4 = jax.random.split(key, 5)
    W = jax.random.normal(kw, (D, F), dtype=jnp.float32) / jnp.sqrt(D)

    # Task 1: classes 0..3 -> 64 // 4 = 16 exemplars per class.
    x1 = jax.random.normal(k1, (N, D), dtype=jnp.float32)
    y1 = jax.random.randint(k2, (N,), 0, 4, dtype=jnp.int32)
    container = mem(W, (x1, y1, [0, 1, 2, 3]), num_classes=4)
    assert len(container) == 4 and all(len(c) == 16 for c in container)

    # Task 2: classes 4..7 -> 64 // 8 = 8 exemplars per class; old lists truncated.
    x2 = jax.random.normal(k3, (N, D), dtype=jnp.float32)
    y2 = jax.random.randint(k4, (N,), 4, 8, dtype=jnp.int32)
    container = mem(W, (x2, y2, [4, 5, 6, 7]), num_classes=4)
    assert len(container) == 8 and all(len(c) == 8 for c in container)
    assert mem.size == 64

    # Run the Pallas kernels directly once more (padded shapes used consistently)
    # and sanity-check the class sums against a plain-JAX reference.
    vmem_limit = _vmem_limit_bytes()
    n_128 = _round_up(max(N, 128), 128)
    tile_n = _pick_tile_n(n_128, D, F, vmem_limit)
    n_pad = _round_up(n_128, tile_n)

    class_ids2 = jnp.asarray([4, 5, 6, 7], jnp.int32)
    y_local2 = _local_labels(y2, class_ids2)
    y_pad2 = jnp.full((1, n_pad), C_PAD, jnp.int32).at[0, :N].set(y_local2)
    x_pad2 = jnp.zeros((n_pad, D), jnp.bfloat16).at[:N].set(x2.astype(jnp.bfloat16))
    w_bf = W.astype(jnp.bfloat16)

    feats2, psums2, f22 = feats_and_class_sums(x_pad2, w_bf, y_pad2, tile_n, vmem_limit)
    sums2 = jnp.sum(psums2, axis=0)
    counts2 = jnp.maximum(
        jnp.sum((y_pad2[0][:, None] == jnp.arange(C_PAD)[None, :]).astype(jnp.float32), axis=0),
        1.0)
    means_t2 = (sums2 / counts2[:, None]).T.astype(jnp.bfloat16)
    dists2 = class_dists(feats2, f22, means_t2, tile_n, vmem_limit)
    jax.block_until_ready((feats2, sums2, dists2))

    # Plain-JAX reference for the fused feats + class-sum pass (same bf16 rounding).
    feats_ref = jnp.dot(x_pad2.astype(jnp.float32), w_bf.astype(jnp.float32))
    oh_ref = (jnp.arange(C_PAD)[:, None] == y_pad2[0][None, :]).astype(jnp.float32)
    sums_ref = oh_ref @ feats_ref.astype(jnp.bfloat16).astype(jnp.float32)
    assert jnp.allclose(sums2, sums_ref, rtol=5e-2, atol=5e-2)

    print("KERNEL_OK")
</pallas_src>

<mosaic_0001>
module attributes {stable_mosaic.version = 11 : i64} {
  func.func @_feat_classsum_kernel(%arg0: i32, %arg1: memref<256x128xbf16, #tpu.memory_space<vmem>>, %arg2: memref<128x128xbf16, #tpu.memory_space<vmem>>, %arg3: memref<1x256xi32, #tpu.memory_space<vmem>>, %arg4: memref<256x128xbf16, #tpu.memory_space<vmem>>, %arg5: memref<1x128x128xf32, #tpu.memory_space<vmem>>, %arg6: memref<256x1xf32, #tpu.memory_space<vmem>>) attributes {dimension_semantics = [#tpu.dimension_semantics<parallel>], iteration_bounds = array<i64: 1>, scalar_prefetch = 0 : i64, scratch_operands = 0 : i64, tpu.core_type = #tpu.core_type<tc>, window_params = [{transform_indices = @transform_0, window_bounds = array<i64: 256, 128>}, {pipeline_mode = #tpu.pipeline_mode<synchronous>, transform_indices = @transform_1, window_bounds = array<i64: 128, 128>}, {transform_indices = @transform_2, window_bounds = array<i64: 1, 256>}, {transform_indices = @transform_3, window_bounds = array<i64: 256, 128>}, {transform_indices = @transform_4, window_bounds = array<i64: 1, 128, 128>}, {transform_indices = @transform_5, window_bounds = array<i64: 256, 1>}]} {
    %c0 = arith.constant 0 : index
    %c0_0 = arith.constant 0 : index
    %0 = vector.load %arg1[%c0, %c0_0] : memref<256x128xbf16, #tpu.memory_space<vmem>>, vector<256x128xbf16>
    %c0_1 = arith.constant 0 : index
    %c0_2 = arith.constant 0 : index
    %1 = vector.load %arg2[%c0_1, %c0_2] : memref<128x128xbf16, #tpu.memory_space<vmem>>, vector<128x128xbf16>
    %cst = arith.constant dense<0.000000e+00> : vector<256x128xf32>
    %2 = tpu.matmul %0, %1, %cst {dimension_numbers = #tpu.dot_dimension_numbers<[1], [0], [0], [1], [0, 0, 1, 1], [], []>} : vector<256x128xbf16>, vector<128x128xbf16>, vector<256x128xf32> -> vector<256x128xf32>
    %3 = arith.truncf %2 : vector<256x128xf32> to vector<256x128xbf16>
    %c0_3 = arith.constant 0 : index
    %c0_4 = arith.constant 0 : index
    %4 = vector.load %arg4[%c0_3, %c0_4] : memref<256x128xbf16, #tpu.memory_space<vmem>>, vector<256x128xbf16>
    tpu.vector_store %arg4[%c0_3, %c0_4], %3 {strides = array<i32>} : memref<256x128xbf16, #tpu.memory_space<vmem>>, vector<256x128xbf16>,
    %5 = arith.mulf %2, %2 : vector<256x128xf32>
    %cst_5 = arith.constant dense<0.000000e+00> : vector<256xf32>
    %6 = vector.multi_reduction <add>, %5, %cst_5 [1] : vector<256x128xf32> to vector<256xf32>
    %7 = vector.shape_cast %6 : vector<256xf32> to vector<256x1xf32>
    %c0_6 = arith.constant 0 : index
    %c0_7 = arith.constant 0 : index
    %8 = vector.load %arg6[%c0_6, %c0_7] : memref<256x1xf32, #tpu.memory_space<vmem>>, vector<256x1xf32>
    tpu.vector_store %arg6[%c0_6, %c0_7], %7 {strides = array<i32>} : memref<256x1xf32, #tpu.memory_space<vmem>>, vector<256x1xf32>,
    %c0_8 = arith.constant 0 : index
    %c0_9 = arith.constant 0 : index
    %9 = vector.load %arg3[%c0_8, %c0_9] : memref<1x256xi32, #tpu.memory_space<vmem>>, vector<1x256xi32>
    %10 = tpu.iota {dimensions = array<i32: 0>} : vector<128x256xi32>
    %11 = vector.broadcast %9 : vector<1x256xi32> to vector<128x256xi32>
    %12 = arith.cmpi eq, %10, %11 : vector<128x256xi32>
    %13 = arith.extui %12 : vector<128x256xi1> to vector<128x256xi32>
    %14 = arith.sitofp %13 : vector<128x256xi32> to vector<128x256xf32>
    %15 = arith.truncf %14 : vector<128x256xf32> to vector<128x256xbf16>
    %cst_10 = arith.constant dense<0.000000e+00> : vector<128x128xf32>
    %16 = tpu.matmul %15, %3, %cst_10 {dimension_numbers = #tpu.dot_dimension_numbers<[1], [0], [0], [1], [0, 0, 1, 1], [], []>} : vector<128x256xbf16>, vector<256x128xbf16>, vector<128x128xf32> -> vector<128x128xf32>
    %c0_11 = arith.constant 0 : index
    %c0_12 = arith.constant 0 : index
    %c0_13 = arith.constant 0 : index
    %17 = vector.load %arg5[%c0_11, %c0_12, %c0_13] : memref<1x128x128xf32, #tpu.memory_space<vmem>>, vector<1x128x128xf32>
    %18 = vector.shape_cast %17 : vector<1x128x128xf32> to vector<128x128xf32>
    %19 = vector.shape_cast %16 : vector<128x128xf32> to vector<1x128x128xf32>
    tpu.vector_store %arg5[%c0_11, %c0_12, %c0_13], %19 {strides = array<i32>} : memref<1x128x128xf32, #tpu.memory_space<vmem>>, vector<1x128x128xf32>,
    return
  }
  func.func @transform_0(%arg0: i32) -> (i32, i32) {
    %c0_i32 = arith.constant 0 : i32
    %c0_i32_0 = arith.constant 0 : i32
    return %arg0, %c0_i32 : i32, i32
  }
  func.func @transform_1(%arg0: i32) -> (i32, i32) {
    %c0_i32 = arith.constant 0 : i32
    %c0_i32_0 = arith.constant 0 : i32
    %c0_i32_1 = arith.constant 0 : i32
    return %c0_i32, %c0_i32_0 : i32, i32
  }
  func.func @transform_2(%arg0: i32) -> (i32, i32) {
    %c0_i32 = arith.constant 0 : i32
    %c0_i32_0 = arith.constant 0 : i32
    return %c0_i32, %arg0 : i32, i32
  }
  func.func @transform_3(%arg0: i32) -> (i32, i32) {
    %c0_i32 = arith.constant 0 : i32
    %c0_i32_0 = arith.constant 0 : i32
    return %arg0, %c0_i32 : i32, i32
  }
  func.func @transform_4(%arg0: i32) -> (i32, i32, i32) {
    %c0_i32 = arith.constant 0 : i32
    %c0_i32_0 = arith.constant 0 : i32
    %c0_i32_1 = arith.constant 0 : i32
    return %arg0, %c0_i32, %c0_i32_0 : i32, i32, i32
  }
  func.func @transform_5(%arg0: i32) -> (i32, i32) {
    %c0_i32 = arith.constant 0 : i32
    %c0_i32_0 = arith.constant 0 : i32
    return %arg0, %c0_i32 : i32, i32
  }
}

module attributes {stable_mosaic.version = 11 : i64} {
  func.func @_feat_classsum_kernel(%arg0: i32, %arg1: memref<256x128xbf16, #tpu.memory_space<vmem>>, %arg2: memref<128x128xbf16, #tpu.memory_space<vmem>>, %arg3: memref<1x256xi32, #tpu.memory_space<vmem>>, %arg4: memref<256x128xbf16, #tpu.memory_space<vmem>>, %arg5: memref<1x128x128xf32, #tpu.memory_space<vmem>>, %arg6: memref<256x1xf32, #tpu.memory_space<vmem>>) attributes {dimension_semantics = [#tpu.dimension_semantics<parallel>], iteration_bounds = array<i64: 1>, scalar_prefetch = 0 : i64, scratch_operands = 0 : i64, tpu.core_type = #tpu.core_type<tc>, window_params = [{transform_indices = @transform_0, window_bounds = array<i64: 256, 128>}, {pipeline_mode = #tpu.pipeline_mode<synchronous>, transform_indices = @transform_1, window_bounds = array<i64: 128, 128>}, {transform_indices = @transform_2, window_bounds = array<i64: 1, 256>}, {transform_indices = @transform_3, window_bounds = array<i64: 256, 128>}, {transform_indices = @transform_4, window_bounds = array<i64: 1, 128, 128>}, {transform_indices = @transform_5, window_bounds = array<i64: 256, 1>}]} {
    %c0 = arith.constant 0 : index
    %c0_0 = arith.constant 0 : index
    %0 = vector.load %arg1[%c0, %c0_0] : memref<256x128xbf16, #tpu.memory_space<vmem>>, vector<256x128xbf16>
    %c0_1 = arith.constant 0 : index
    %c0_2 = arith.constant 0 : index
    %1 = vector.load %arg2[%c0_1, %c0_2] : memref<128x128xbf16, #tpu.memory_space<vmem>>, vector<128x128xbf16>
    %cst = arith.constant dense<0.000000e+00> : vector<256x128xf32>
    %2 = tpu.matmul %0, %1, %cst {dimension_numbers = #tpu.dot_dimension_numbers<[1], [0], [0], [1], [0, 0, 1, 1], [], []>} : vector<256x128xbf16>, vector<128x128xbf16>, vector<256x128xf32> -> vector<256x128xf32>
    %3 = arith.truncf %2 : vector<256x128xf32> to vector<256x128xbf16>
    %c0_3 = arith.constant 0 : index
    %c0_4 = arith.constant 0 : index
    %4 = vector.load %arg4[%c0_3, %c0_4] : memref<256x128xbf16, #tpu.memory_space<vmem>>, vector<256x128xbf16>
    tpu.vector_store %arg4[%c0_3, %c0_4], %3 {strides = array<i32>} : memref<256x128xbf16, #tpu.memory_space<vmem>>, vector<256x128xbf16>,
    %5 = arith.mulf %2, %2 : vector<256x128xf32>
    %cst_5 = arith.constant dense<0.000000e+00> : vector<256xf32>
    %6 = vector.multi_reduction <add>, %5, %cst_5 [1] : vector<256x128xf32> to vector<256xf32>
    %7 = vector.shape_cast %6 : vector<256xf32> to vector<256x1xf32>
    %c0_6 = arith.constant 0 : index
    %c0_7 = arith.constant 0 : index
    %8 = vector.load %arg6[%c0_6, %c0_7] : memref<256x1xf32, #tpu.memory_space<vmem>>, vector<256x1xf32>
    tpu.vector_store %arg6[%c0_6, %c0_7], %7 {strides = array<i32>} : memref<256x1xf32, #tpu.memory_space<vmem>>, vector<256x1xf32>,
    %c0_8 = arith.constant 0 : index
    %c0_9 = arith.constant 0 : index
    %9 = vector.load %arg3[%c0_8, %c0_9] : memref<1x256xi32, #tpu.memory_space<vmem>>, vector<1x256xi32>
    %10 = tpu.iota {dimensions = array<i32: 0>} : vector<128x256xi32>
    %11 = vector.broadcast %9 : vector<1x256xi32> to vector<128x256xi32>
    %12 = arith.cmpi eq, %10, %11 : vector<128x256xi32>
    %13 = arith.extui %12 : vector<128x256xi1> to vector<128x256xi32>
    %14 = arith.sitofp %13 : vector<128x256xi32> to vector<128x256xf32>
    %15 = arith.truncf %14 : vector<128x256xf32> to vector<128x256xbf16>
    %cst_10 = arith.constant dense<0.000000e+00> : vector<128x128xf32>
    %16 = tpu.matmul %15, %3, %cst_10 {dimension_numbers = #tpu.dot_dimension_numbers<[1], [0], [0], [1], [0, 0, 1, 1], [], []>} : vector<128x256xbf16>, vector<256x128xbf16>, vector<128x128xf32> -> vector<128x128xf32>
    %c0_11 = arith.constant 0 : index
    %c0_12 = arith.constant 0 : index
    %c0_13 = arith.constant 0 : index
    %17 = vector.load %arg5[%c0_11, %c0_12, %c0_13] : memref<1x128x128xf32, #tpu.memory_space<vmem>>, vector<1x128x128xf32>
    %18 = vector.shape_cast %17 : vector<1x128x128xf32> to vector<128x128xf32>
    %19 = vector.shape_cast %16 : vector<128x128xf32> to vector<1x128x128xf32>
    tpu.vector_store %arg5[%c0_11, %c0_12, %c0_13], %19 {strides = array<i32>} : memref<1x128x128xf32, #tpu.memory_space<vmem>>, vector<1x128x128xf32>,
    return
  }
  func.func @transform_0(%arg0: i32) -> (i32, i32) {
    %c0_i32 = arith.constant 0 : i32
    %c0_i32_0 = arith.constant 0 : i32
    return %arg0, %c0_i32 : i32, i32
  }
  func.func @transform_1(%arg0: i32) -> (i32, i32) {
    %c0_i32 = arith.constant 0 : i32
    %c0_i32_0 = arith.constant 0 : i32
    %c0_i32_1 = arith.constant 0 : i32
    return %c0_i32, %c0_i32_0 : i32, i32
  }
  func.func @transform_2(%arg0: i32) -> (i32, i32) {
    %c0_i32 = arith.constant 0 : i32
    %c0_i32_0 = arith.constant 0 : i32
    return %c0_i32, %arg0 : i32, i32
  }
  func.func @transform_3(%arg0: i32) -> (i32, i32) {
    %c0_i32 = arith.constant 0 : i32
    %c0_i32_0 = arith.constant 0 : i32
    return %arg0, %c0_i32 : i32, i32
  }
  func.func @transform_4(%arg0: i32) -> (i32, i32, i32) {
    %c0_i32 = arith.constant 0 : i32
    %c0_i32_0 = arith.constant 0 : i32
    %c0_i32_1 = arith.constant 0 : i32
    return %arg0, %c0_i32, %c0_i32_0 : i32, i32, i32
  }
  func.func @transform_5(%arg0: i32) -> (i32, i32) {
    %c0_i32 = arith.constant 0 : i32
    %c0_i32_0 = arith.constant 0 : i32
    return %arg0, %c0_i32 : i32, i32
  }
}

</mosaic_0001>

<llo_original>
// kernel: tpu_custom_call.1
$region0: #{tpu_custom_call.1}
  #allocation0 [shape = 'u32[]', space=smem, size = 0x4, offset = 0x4, fixed_abs, tag = 'smem constant byte address 0x4 - core index']
  #allocation1 [shape = 'u32[144,128]{1,0:T(1,128)}', space=vmem, size = 0x12000, scoped, tag = 'internal scratch']
  %s0 = inlined_call_operand.hbm [shape: bf16[256,128], index: 0, kind: input, shape index: {}]
  %s1 = inlined_call_operand.hbm [shape: bf16[128,128], index: 1, kind: input, shape index: {}]
  %s2 = inlined_call_operand.vmem [shape: s32[1,256], index: 2, kind: input, shape index: {}]
  %s3 = inlined_call_operand.hbm [shape: bf16[256,128], index: 3, kind: output, shape index: {0}]
  %s4 = inlined_call_operand.hbm [shape: f32[1,128,128], index: 4, kind: output, shape index: {1}]
  %s5 = inlined_call_operand.vmem [shape: f32[256,1], index: 5, kind: output, shape index: {2}]
  %6 = xla_tuple %s3, %s4, %s5
  %s7 = sld [smem:[#allocation0]]
  $region46: #{tpu_custom_call.1} parent=0
    _
  %s9 = ssub.s32 1, %s7
  %s10 = scalar_select 0, %s9, %s7
  $region1: #{tpu_custom_call.1} parent=0
    #allocation2 [shape = 'u8[65536]{0}', space=vmem, size = 0x10000, scoped, tag = 'input window, operand 0, single buffered']
    #allocation3 [shape = 's32[1]{0}', space=sflag, size = 0x4, scoped, tag = 'scoped memory for tpu_custom_call.1']
    #allocation4 [shape = 's32[1]{0}', space=sflag, size = 0x4, scoped, tag = 'scoped memory for tpu_custom_call.1']
    #allocation5 [shape = 'u8[32768]{0}', space=vmem, size = 0x8000, scoped, tag = 'input window, operand 1, single buffered']
    #allocation6 [shape = 's32[1]{0}', space=sflag, size = 0x4, scoped, tag = 'scoped memory for tpu_custom_call.1']
    #allocation7 [shape = 'u8[65536]{0}', space=vmem, size = 0x10000, scoped, tag = 'output window, operand 0, single buffered']
    #allocation8 [shape = 'u8[65536]{0}', space=vmem, size = 0x10000, scoped, tag = 'output window, operand 1, single buffered']
    #allocation9 [shape = 's32[1]{0}', space=sflag, size = 0x4, scoped, tag = 'scoped memory for tpu_custom_call.1']
    %11 = vsyncpa [#allocation3], 0
    %12 = vsyncpa [#allocation6], 0
    %13 = vsyncpa [#allocation4], 0
    %14 = vsyncpa [#allocation9], 0
    // Predicated region
    $region2: #{tpu_custom_call.1} parent=1 // pred_check
      _
    $region3: #{tpu_custom_call.1} parent=1 // pred_check_branch
      %16 = sbr.rel (0) target = $region5
    $region4: #{tpu_custom_call.1} parent=1 // pred_region
      %s18 = ssub.s32 2048, 2048
      %19 = vsyncadd [#allocation3], %s18
      %s20 = sshll.u32 [#allocation2], 4
      %s21 = int_to_ptr.vmem [resolvable:$true] %s20
      %26 = dma.hbm_to_vmem [thread:$0]  %s0, 2048, %s21, [#allocation3], 64, 64, 4
    $region5: #{tpu_custom_call.1} parent=1 // pred_fallthru
      _
    // Predicated region
    $region6: #{tpu_custom_call.1} parent=1 // pred_check
      _
    $region7: #{tpu_custom_call.1} parent=1 // pred_check_branch
      %28 = sbr.rel (0) target = $region9
    $region8: #{tpu_custom_call.1} parent=1 // pred_region
      %s30 = ssub.s32 1024, 1024
      %31 = vsyncadd [#allocation6], %s30
      %s32 = sshll.u32 [#allocation5], 4
      %s33 = int_to_ptr.vmem [resolvable:$true] %s32
      %38 = dma.hbm_to_vmem [thread:$0]  %s1, 1024, %s33, [#allocation6], 64, 64, 4
    $region9: #{tpu_custom_call.1} parent=1 // pred_fallthru
      _
    // Predicated region
    $region10: #{tpu_custom_call.1} parent=1 // pred_check
      _
    $region11: #{tpu_custom_call.1} parent=1 // pred_check_branch
      %40 = sbr.rel (0) target = $region13
    $region12: #{tpu_custom_call.1} parent=1 // pred_region
      _
    $region13: #{tpu_custom_call.1} parent=1 // pred_fallthru
      _
    // Predicated region
    $region14: #{tpu_custom_call.1} parent=1 // pred_check
      _
    $region15: #{tpu_custom_call.1} parent=1 // pred_check_branch
      %42 = sbr.rel (0) target = $region17
    $region16: #{tpu_custom_call.1} parent=1 // pred_region
      %43 = dma.done [#allocation3], 2048
    $region17: #{tpu_custom_call.1} parent=1 // pred_fallthru
      _
    // Predicated region
    $region18: #{tpu_custom_call.1} parent=1 // pred_check
      _
    $region19: #{tpu_custom_call.1} parent=1 // pred_check_branch
      %45 = sbr.rel (0) target = $region21
    $region20: #{tpu_custom_call.1} parent=1 // pred_region
      %46 = dma.done [#allocation6], 1024
    $region21: #{tpu_custom_call.1} parent=1 // pred_fallthru
      _
    %v48 = vld [vmem:[#allocation2] sm:$0xf]
    %v49 = vld [vmem:[#allocation2 + $0x4] sm:$0xf]
    %v50 = vld [vmem:[#allocation2 + $0x8] sm:$0xf]
    %v51 = vld [vmem:[#allocation2 + $0xc] sm:$0xf]
    %v52 = vld [vmem:[#allocation2 + $0x10] sm:$0xf]
    %v53 = vld [vmem:[#allocation2 + $0x14] sm:$0xf]
    %v54 = vld [vmem:[#allocation2 + $0x18] sm:$0xf]
    %v55 = vld [vmem:[#allocation2 + $0x1c] sm:$0xf]
    %v56 = vld [vmem:[#allocation2 + $0x20] sm:$0xf]
    %v57 = vld [vmem:[#allocation2 + $0x24] sm:$0xf]
    %v58 = vld [vmem:[#allocation2 + $0x28] sm:$0xf]
    %v59 = vld [vmem:[#allocation2 + $0x2c] sm:$0xf]
    %v60 = vld [vmem:[#allocation2 + $0x30] sm:$0xf]
    %v61 = vld [vmem:[#allocation2 + $0x34] sm:$0xf]
    %v62 = vld [vmem:[#allocation2 + $0x38] sm:$0xf]
    %v63 = vld [vmem:[#allocation2 + $0x3c] sm:$0xf]
    %v64 = vld [vmem:[#allocation2 + $0x40] sm:$0xf]
    %v65 = vld [vmem:[#allocation2 + $0x44] sm:$0xf]
    %v66 = vld [vmem:[#allocation2 + $0x48] sm:$0xf]
    %v67 = vld [vmem:[#allocation2 + $0x4c] sm:$0xf]
    %v68 = vld [vmem:[#allocation2 + $0x50] sm:$0xf]
    %v69 = vld [vmem:[#allocation2 + $0x54] sm:$0xf]
    %v70 = vld [vmem:[#allocation2 + $0x58] sm:$0xf]
    %v71 = vld [vmem:[#allocation2 + $0x5c] sm:$0xf]
    %v72 = vld [vmem:[#allocation2 + $0x60] sm:$0xf]
    %v73 = vld [vmem:[#allocation2 + $0x64] sm:$0xf]
    %v74 = vld [vmem:[#allocation2 + $0x68] sm:$0xf]
    %v75 = vld [vmem:[#allocation2 + $0x6c] sm:$0xf]
    %v76 = vld [vmem:[#allocation2 + $0x70] sm:$0xf]
    %v77 = vld [vmem:[#allocation2 + $0x74] sm:$0xf]
    %v78 = vld [vmem:[#allocation2 + $0x78] sm:$0xf]
    %v79 = vld [vmem:[#allocation2 + $0x7c] sm:$0xf]
    %v80 = vld [vmem:[#allocation5] sm:$0xf]
    %v81 = vld [vmem:[#allocation5 + $0x4] sm:$0xf]
    %v82 = vld [vmem:[#allocation5 + $0x8] sm:$0xf]
    %v83 = vld [vmem:[#allocation5 + $0xc] sm:$0xf]
    %v84 = vld [vmem:[#allocation5 + $0x10] sm:$0xf]
    %v85 = vld [vmem:[#allocation5 + $0x14] sm:$0xf]
    %v86 = vld [vmem:[#allocation5 + $0x18] sm:$0xf]
    %v87 = vld [vmem:[#allocation5 + $0x1c] sm:$0xf]
    %v88 = vld [vmem:[#allocation5 + $0x20] sm:$0xf]
    %v89 = vld [vmem:[#allocation5 + $0x24] sm:$0xf]
    %v90 = vld [vmem:[#allocation5 + $0x28] sm:$0xf]
    %v91 = vld [vmem:[#allocation5 + $0x2c] sm:$0xf]
    %v92 = vld [vmem:[#allocation5 + $0x30] sm:$0xf]
    %v93 = vld [vmem:[#allocation5 + $0x34] sm:$0xf]
    %v94 = vld [vmem:[#allocation5 + $0x38] sm:$0xf]
    %v95 = vld [vmem:[#allocation5 + $0x3c] sm:$0xf]
    %v128 = vunpack.c.l.b16 %v48
    %v129 = vunpack.c.l.b16 %v49
    %v130 = vunpack.c.l.b16 %v50
    %v131 = vunpack.c.l.b16 %v51
    %v132 = vunpack.c.l.b16 %v52
    %v133 = vunpack.c.l.b16 %v53
    %v134 = vunpack.c.l.b16 %v54
    %v135 = vunpack.c.l.b16 %v55
    %v136 = vunpack.c.l.b16 %v56
    %v137 = vunpack.c.l.b16 %v57
    %v138 = vunpack.c.l.b16 %v58
    %v139 = vunpack.c.l.b16 %v59
    %v140 = vunpack.c.l.b16 %v60
    %v141 = vunpack.c.l.b16 %v61
    %v142 = vunpack.c.l.b16 %v62
    %v143 = vunpack.c.l.b16 %v63
    %v144 = vunpack.c.l.b16 %v64
    %v145 = vunpack.c.l.b16 %v65
    %v146 = vunpack.c.l.b16 %v66
    %v147 = vunpack.c.l.b16 %v67
    %v148 = vunpack.c.l.b16 %v68
    %v149 = vunpack.c.l.b16 %v69
    %v150 = vunpack.c.l.b16 %v70
    %v151 = vunpack.c.l.b16 %v71
    %v152 = vunpack.c.l.b16 %v72
    %v153 = vunpack.c.l.b16 %v73
    %v154 = vunpack.c.l.b16 %v74
    %v155 = vunpack.c.l.b16 %v75
    %v156 = vunpack.c.l.b16 %v76
    %v157 = vunpack.c.l.b16 %v77
    %v158 = vunpack.c.l.b16 %v78
    %v159 = vunpack.c.l.b16 %v79
    %v160 = vpack.c.b16 %v129, %v128
    %v161 = vpack.c.b16 %v131, %v130
    %v162 = vpack.c.b16 %v133, %v132
    %v163 = vpack.c.b16 %v135, %v134
    %v164 = vpack.c.b16 %v137, %v136
    %v165 = vpack.c.b16 %v139, %v138
    %v166 = vpack.c.b16 %v141, %v140
    %v167 = vpack.c.b16 %v143, %v142
    %v168 = vpack.c.b16 %v145, %v144
    %v169 = vpack.c.b16 %v147, %v146
    %v170 = vpack.c.b16 %v149, %v148
    %v171 = vpack.c.b16 %v151, %v150
    %v172 = vpack.c.b16 %v153, %v152
    %v173 = vpack.c.b16 %v155, %v154
    %v174 = vpack.c.b16 %v157, %v156
    %v175 = vpack.c.b16 %v159, %v158
    %v208 = vunpack.c.l.b16 %v80
    %v209 = vunpack.c.l.b16 %v81
    %v210 = vunpack.c.l.b16 %v82
    %v211 = vunpack.c.l.b16 %v83
    %v212 = vunpack.c.l.b16 %v84
    %v213 = vunpack.c.l.b16 %v85
    %v214 = vunpack.c.l.b16 %v86
    %v215 = vunpack.c.l.b16 %v87
    %v216 = vunpack.c.l.b16 %v88
    %v217 = vunpack.c.l.b16 %v89
    %v218 = vunpack.c.l.b16 %v90
    %v219 = vunpack.c.l.b16 %v91
    %v220 = vunpack.c.l.b16 %v92
    %v221 = vunpack.c.l.b16 %v93
    %v222 = vunpack.c.l.b16 %v94
    %v223 = vunpack.c.l.b16 %v95
    %v224 = vpack.c.b16 %v209, %v208
    %v225 = vpack.c.b16 %v211, %v210
    %v226 = vpack.c.b16 %v213, %v212
    %v227 = vpack.c.b16 %v215, %v214
    %v228 = vpack.c.b16 %v217, %v216
    %v229 = vpack.c.b16 %v219, %v218
    %v230 = vpack.c.b16 %v221, %v220
    %v231 = vpack.c.b16 %v223, %v222
    %240 = vmatprep.subr.bf16.mxu0 0
    %241 = vmatpush1.bf16.msra.mxu0 %v231
    %242 = vmatprep.subr.bf16.mxu0 0
    %243 = vmatpush1.bf16.msra.mxu0 %v230
    %244 = vmatprep.subr.bf16.mxu0 0
    %245 = vmatpush1.bf16.msra.mxu0 %v229
    %246 = vmatprep.subr.bf16.mxu0 0
    %247 = vmatpush1.bf16.msra.mxu0 %v228
    %248 = vmatprep.subr.bf16.mxu0 0
    %249 = vmatpush1.bf16.msra.mxu0 %v227
    %250 = vmatprep.subr.bf16.mxu0 0
    %251 = vmatpush1.bf16.msra.mxu0 %v226
    %252 = vmatprep.subr.bf16.mxu0 0
    %253 = vmatpush1.bf16.msra.mxu0 %v225
    %254 = vmatprep.subr.bf16.mxu0 0
    %255 = vmatpush1.bf16.msra.mxu0 %v224
    %256 = vmatprep.subr.bf16.mxu0 0
    %257 = vmatpush2.bf16.msra.mxu0 0
    %258 = vmatprep.subr.bf16.mxu0 0
    %259 = vmatpush2.bf16.msra.mxu0 0
    %260 = vmatprep.subr.bf16.mxu0 0
    %261 = vmatpush2.bf16.msra.mxu0 0
    %262 = vmatprep.subr.bf16.mxu0 0
    %263 = vmatpush2.bf16.msra.mxu0 0
    %264 = vmatprep.subr.bf16.mxu0 0
    %265 = vmatpush2.bf16.msra.mxu0 0
    %266 = vmatprep.subr.bf16.mxu0 0
    %267 = vmatpush2.bf16.msra.mxu0 0
    %268 = vmatprep.subr.bf16.mxu0 0
    %269 = vmatpush2.bf16.msra.mxu0 0
    %270 = vmatprep.subr.bf16.mxu0 0
    %271 = vmatpush2.bf16.msra.mxu0 0
    %272 = vmatprep.mubr.bf16.mxu0 0
    %273 = vmatmul.mubr.bf16.gmra.mxu0 %v160
    %v274 = vpop.f32.mrf.mxu0
    %v275 = vadd.f32 0.0, %v274
    %v276 = vpop.f32.mrf.mxu0
    %v277 = vpop.f32.mrf.mxu0
    %v278 = vadd.f32 0.0, %v277
    %v279 = vpop.f32.mrf.mxu0
    %280 = vmatprep.mubr.bf16.mxu0 0
    %281 = vmatmul.mubr.bf16.gmra.mxu0 %v161
    %v282 = vpop.f32.mrf.mxu0
    %v283 = vadd.f32 0.0, %v282
    %v284 = vpop.f32.mrf.mxu0
    %v285 = vpop.f32.mrf.mxu0
    %v286 = vadd.f32 0.0, %v285
    %v287 = vpop.f32.mrf.mxu0
    %288 = vmatprep.mubr.bf16.mxu0 0
    %289 = vmatmul.mubr.bf16.gmra.mxu0 %v162
    %v290 = vpop.f32.mrf.mxu0
    %v291 = vadd.f32 0.0, %v290
    %v292 = vpop.f32.mrf.mxu0
    %v293 = vpop.f32.mrf.mxu0
    %v294 = vadd.f32 0.0, %v293
    %v295 = vpop.f32.mrf.mxu0
    %296 = vmatprep.mubr.bf16.mxu0 0
    %297 = vmatmul.mubr.bf16.gmra.mxu0 %v163
    %v298 = vpop.f32.mrf.mxu0
    %v299 = vadd.f32 0.0, %v298
    %v300 = vpop.f32.mrf.mxu0
    %v301 = vpop.f32.mrf.mxu0
    %v302 = vadd.f32 0.0, %v301
    %v303 = vpop.f32.mrf.mxu0
    %304 = vmatprep.mubr.bf16.mxu0 0
    %305 = vmatmul.mubr.bf16.gmra.mxu0 %v164
    %v306 = vpop.f32.mrf.mxu0
    %v307 = vadd.f32 0.0, %v306
    %v308 = vpop.f32.mrf.mxu0
    %v309 = vpop.f32.mrf.mxu0
    %v310 = vadd.f32 0.0, %v309
    %v311 = vpop.f32.mrf.mxu0
    %312 = vmatprep.mubr.bf16.mxu0 0
    %313 = vmatmul.mubr.bf16.gmra.mxu0 %v165
    %v314 = vpop.f32.mrf.mxu0
    %v315 = vadd.f32 0.0, %v314
    %v316 = vpop.f32.mrf.mxu0
    %v317 = vpop.f32.mrf.mxu0
    %v318 = vadd.f32 0.0, %v317
    %v319 = vpop.f32.mrf.mxu0
    %320 = vmatprep.mubr.bf16.mxu0 0
    %321 = vmatmul.mubr.bf16.gmra.mxu0 %v166
    %v322 = vpop.f32.mrf.mxu0
    %v323 = vadd.f32 0.0, %v322
    %v324 = vpop.f32.mrf.mxu0
    %v325 = vpop.f32.mrf.mxu0
    %v326 = vadd.f32 0.0, %v325
    %v327 = vpop.f32.mrf.mxu0
    %328 = vmatprep.mubr.bf16.mxu0 0
    %329 = vmatmul.mubr.bf16.gmra.mxu0 %v167
    %v330 = vpop.f32.mrf.mxu0
    %v331 = vadd.f32 0.0, %v330
    %v332 = vpop.f32.mrf.mxu0
    %v333 = vpop.f32.mrf.mxu0
    %v334 = vadd.f32 0.0, %v333
    %v335 = vpop.f32.mrf.mxu0
    %336 = vmatprep.mubr.bf16.mxu0 0
    %337 = vmatmul.mubr.bf16.gmra.mxu0 %v168
    %v338 = vpop.f32.mrf.mxu0
    %v339 = vadd.f32 0.0, %v338
    %v340 = vpop.f32.mrf.mxu0
    %v341 = vpop.f32.mrf.mxu0
    %v342 = vadd.f32 0.0, %v341
    %v343 = vpop.f32.mrf.mxu0
    %344 = vmatprep.mubr.bf16.mxu0 0
    %345 = vmatmul.mubr.bf16.gmra.mxu0 %v169
    %v346 = vpop.f32.mrf.mxu0
    %v347 = vadd.f32 0.0, %v346
    %v348 = vpop.f32.mrf.mxu0
    %v349 = vpop.f32.mrf.mxu0
    %v350 = vadd.f32 0.0, %v349
    %v351 = vpop.f32.mrf.mxu0
    %352 = vmatprep.mubr.bf16.mxu0 0
    %353 = vmatmul.mubr.bf16.gmra.mxu0 %v170
    %v354 = vpop.f32.mrf.mxu0
    %v355 = vadd.f32 0.0, %v354
    %v356 = vpop.f32.mrf.mxu0
    %v357 = vpop.f32.mrf.mxu0
    %v358 = vadd.f32 0.0, %v357
    %v359 = vpop.f32.mrf.mxu0
    %360 = vmatprep.mubr.bf16.mxu0 0
    %361 = vmatmul.mubr.bf16.gmra.mxu0 %v171
    %v362 = vpop.f32.mrf.mxu0
    %v363 = vadd.f32 0.0, %v362
    %v364 = vpop.f32.mrf.mxu0
    %v365 = vpop.f32.mrf.mxu0
    %v366 = vadd.f32 0.0, %v365
    %v367 = vpop.f32.mrf.mxu0
    %368 = vmatprep.mubr.bf16.mxu0 0
    %369 = vmatmul.mubr.bf16.gmra.mxu0 %v172
    %v370 = vpop.f32.mrf.mxu0
    %v371 = vadd.f32 0.0, %v370
    %v372 = vpop.f32.mrf.mxu0
    %v373 = vpop.f32.mrf.mxu0
    %v374 = vadd.f32 0.0, %v373
    %v375 = vpop.f32.mrf.mxu0
    %376 = vmatprep.mubr.bf16.mxu0 0
    %377 = vmatmul.mubr.bf16.gmra.mxu0 %v173
    %v378 = vpop.f32.mrf.mxu0
    %v379 = vadd.f32 0.0, %v378
    %v380 = vpop.f32.mrf.mxu0
    %v381 = vpop.f32.mrf.mxu0
    %v382 = vadd.f32 0.0, %v381
    %v383 = vpop.f32.mrf.mxu0
    %384 = vmatprep.mubr.bf16.mxu0 0
    %385 = vmatmul.mubr.bf16.gmra.mxu0 %v174
    %v386 = vpop.f32.mrf.mxu0
    %v387 = vadd.f32 0.0, %v386
    %v388 = vpop.f32.mrf.mxu0
    %v389 = vpop.f32.mrf.mxu0
    %v390 = vadd.f32 0.0, %v389
    %v391 = vpop.f32.mrf.mxu0
    %392 = vmatprep.mubr.bf16.mxu0 0
    %393 = vmatmul.mubr.bf16.gmra.mxu0 %v175
    %v394 = vpop.f32.mrf.mxu0
    %v395 = vadd.f32 0.0, %v394
    %v396 = vpop.f32.mrf.mxu0
    %v397 = vpop.f32.mrf.mxu0
    %v398 = vadd.f32 0.0, %v397
    %v399 = vpop.f32.mrf.mxu0
    %400 = vdwg.mxu0
    %v401 = vpack.c.bf16 %v278, %v275
    %v402 = vpack.c.bf16 %v286, %v283
    %v403 = vpack.c.bf16 %v294, %v291
    %v404 = vpack.c.bf16 %v302, %v299
    %v405 = vpack.c.bf16 %v310, %v307
    %v406 = vpack.c.bf16 %v318, %v315
    %v407 = vpack.c.bf16 %v326, %v323
    %v408 = vpack.c.bf16 %v334, %v331
    %v409 = vpack.c.bf16 %v342, %v339
    %v410 = vpack.c.bf16 %v350, %v347
    %v411 = vpack.c.bf16 %v358, %v355
    %v412 = vpack.c.bf16 %v366, %v363
    %v413 = vpack.c.bf16 %v374, %v371
    %v414 = vpack.c.bf16 %v382, %v379
    %v415 = vpack.c.bf16 %v390, %v387
    %v416 = vpack.c.bf16 %v398, %v395
    %v433 = vunpack.c.l.b16 %v401
    %v434 = vunpack.c.h.b16 %v401
    %v435 = vunpack.c.l.b16 %v402
    %v436 = vunpack.c.h.b16 %v402
    %v437 = vunpack.c.l.b16 %v403
    %v438 = vunpack.c.h.b16 %v403
    %v439 = vunpack.c.l.b16 %v404
    %v440 = vunpack.c.h.b16 %v404
    %v441 = vunpack.c.l.b16 %v405
    %v442 = vunpack.c.h.b16 %v405
    %v443 = vunpack.c.l.b16 %v406
    %v444 = vunpack.c.h.b16 %v406
    %v445 = vunpack.c.l.b16 %v407
    %v446 = vunpack.c.h.b16 %v407
    %v447 = vunpack.c.l.b16 %v408
    %v448 = vunpack.c.h.b16 %v408
    %v449 = vunpack.c.l.b16 %v409
    %v450 = vunpack.c.h.b16 %v409
    %v451 = vunpack.c.l.b16 %v410
    %v452 = vunpack.c.h.b16 %v410
    %v453 = vunpack.c.l.b16 %v411
    %v454 = vunpack.c.h.b16 %v411
    %v455 = vunpack.c.l.b16 %v412
    %v456 = vunpack.c.h.b16 %v412
    %v457 = vunpack.c.l.b16 %v413
    %v458 = vunpack.c.h.b16 %v413
    %v459 = vunpack.c.l.b16 %v414
    %v460 = vunpack.c.h.b16 %v414
    %v461 = vunpack.c.l.b16 %v415
    %v462 = vunpack.c.h.b16 %v415
    %v463 = vunpack.c.l.b16 %v416
    %v464 = vunpack.c.h.b16 %v416
    %v465 = vpack.c.b16 %v433, %v433
    %v466 = vpack.c.b16 %v434, %v434
    %v467 = vpack.c.b16 %v435, %v435
    %v468 = vpack.c.b16 %v436, %v436
    %v469 = vpack.c.b16 %v437, %v437
    %v470 = vpack.c.b16 %v438, %v438
    %v471 = vpack.c.b16 %v439, %v439
    %v472 = vpack.c.b16 %v440, %v440
    %v473 = vpack.c.b16 %v441, %v441
    %v474 = vpack.c.b16 %v442, %v442
    %v475 = vpack.c.b16 %v443, %v443
    %v476 = vpack.c.b16 %v444, %v444
    %v477 = vpack.c.b16 %v445, %v445
    %v478 = vpack.c.b16 %v446, %v446
    %v479 = vpack.c.b16 %v447, %v447
    %v480 = vpack.c.b16 %v448, %v448
    %v481 = vpack.c.b16 %v449, %v449
    %v482 = vpack.c.b16 %v450, %v450
    %v483 = vpack.c.b16 %v451, %v451
    %v484 = vpack.c.b16 %v452, %v452
    %v485 = vpack.c.b16 %v453, %v453
    %v486 = vpack.c.b16 %v454, %v454
    %v487 = vpack.c.b16 %v455, %v455
    %v488 = vpack.c.b16 %v456, %v456
    %v489 = vpack.c.b16 %v457, %v457
    %v490 = vpack.c.b16 %v458, %v458
    %v491 = vpack.c.b16 %v459, %v459
    %v492 = vpack.c.b16 %v460, %v460
    %v493 = vpack.c.b16 %v461, %v461
    %v494 = vpack.c.b16 %v462, %v462
    %v495 = vpack.c.b16 %v463, %v463
    %v496 = vpack.c.b16 %v464, %v464
    %529 = vst [vmem:[#allocation7] sm:$0xf] %v465
    %530 = vst [vmem:[#allocation7 + $0x4] sm:$0xf] %v466
    %531 = vst [vmem:[#allocation7 + $0x8] sm:$0xf] %v467
    %532 = vst [vmem:[#allocation7 + $0xc] sm:$0xf] %v468
    %533 = vst [vmem:[#allocation7 + $0x10] sm:$0xf] %v469
    %534 = vst [vmem:[#allocation7 + $0x14] sm:$0xf] %v470
    %535 = vst [vmem:[#allocation7 + $0x18] sm:$0xf] %v471
    %536 = vst [vmem:[#allocation7 + $0x1c] sm:$0xf] %v472
    %537 = vst [vmem:[#allocation7 + $0x20] sm:$0xf] %v473
    %538 = vst [vmem:[#allocation7 + $0x24] sm:$0xf] %v474
    %539 = vst [vmem:[#allocation7 + $0x28] sm:$0xf] %v475
    %540 = vst [vmem:[#allocation7 + $0x2c] sm:$0xf] %v476
    %541 = vst [vmem:[#allocation7 + $0x30] sm:$0xf] %v477
    %542 = vst [vmem:[#allocation7 + $0x34] sm:$0xf] %v478
    %543 = vst [vmem:[#allocation7 + $0x38] sm:$0xf] %v479
    %544 = vst [vmem:[#allocation7 + $0x3c] sm:$0xf] %v480
    %545 = vst [vmem:[#allocation7 + $0x40] sm:$0xf] %v481
    %546 = vst [vmem:[#allocation7 + $0x44] sm:$0xf] %v482
    %547 = vst [vmem:[#allocation7 + $0x48] sm:$0xf] %v483
    %548 = vst [vmem:[#allocation7 + $0x4c] sm:$0xf] %v484
    %549 = vst [vmem:[#allocation7 + $0x50] sm:$0xf] %v485
    %550 = vst [vmem:[#allocation7 + $0x54] sm:$0xf] %v486
    %551 = vst [vmem:[#allocation7 + $0x58] sm:$0xf] %v487
    %552 = vst [vmem:[#allocation7 + $0x5c] sm:$0xf] %v488
    %553 = vst [vmem:[#allocation7 + $0x60] sm:$0xf] %v489
    %554 = vst [vmem:[#allocation7 + $0x64] sm:$0xf] %v490
    %555 = vst [vmem:[#allocation7 + $0x68] sm:$0xf] %v491
    %556 = vst [vmem:[#allocation7 + $0x6c] sm:$0xf] %v492
    %557 = vst [vmem:[#allocation7 + $0x70] sm:$0xf] %v493
    %558 = vst [vmem:[#allocation7 + $0x74] sm:$0xf] %v494
    %559 = vst [vmem:[#allocation7 + $0x78] sm:$0xf] %v495
    %560 = vst [vmem:[#allocation7 + $0x7c] sm:$0xf] %v496
    %v561 = vmul.f32 %v275, %v275
    %v562 = vmul.f32 %v278, %v278
    %v563 = vmul.f32 %v283, %v283
    %v564 = vmul.f32 %v286, %v286
    %v565 = vmul.f32 %v291, %v291
    %v566 = vmul.f32 %v294, %v294
    %v567 = vmul.f32 %v299, %v299
    %v568 = vmul.f32 %v302, %v302
    %v569 = vmul.f32 %v307, %v307
    %v570 = vmul.f32 %v310, %v310
    %v571 = vmul.f32 %v315, %v315
    %v572 = vmul.f32 %v318, %v318
    %v573 = vmul.f32 %v323, %v323
    %v574 = vmul.f32 %v326, %v326
    %v575 = vmul.f32 %v331, %v331
    %v576 = vmul.f32 %v334, %v334
    %v577 = vmul.f32 %v339, %v339
    %v578 = vmul.f32 %v342, %v342
    %v579 = vmul.f32 %v347, %v347
    %v580 = vmul.f32 %v350, %v350
    %v581 = vmul.f32 %v355, %v355
    %v582 = vmul.f32 %v358, %v358
    %v583 = vmul.f32 %v363, %v363
    %v584 = vmul.f32 %v366, %v366
    %v585 = vmul.f32 %v371, %v371
    %v586 = vmul.f32 %v374, %v374
    %v587 = vmul.f32 %v379, %v379
    %v588 = vmul.f32 %v382, %v382
    %v589 = vmul.f32 %v387, %v387
    %v590 = vmul.f32 %v390, %v390
    %v591 = vmul.f32 %v395, %v395
    %v592 = vmul.f32 %v398, %v398
    %593 = vadd.xlane.f32.xlu0 %v561
    %v594 = vpop.xlane.xlu0 %593
    %595 = vadd.xlane.f32.xlu0 %v562
    %v596 = vpop.xlane.xlu0 %595
    %597 = vadd.xlane.f32.xlu0 %v563
    %v598 = vpop.xlane.xlu0 %597
    %599 = vadd.xlane.f32.xlu0 %v564
    %v600 = vpop.xlane.xlu0 %599
    %601 = vadd.xlane.f32.xlu0 %v565
    %v602 = vpop.xlane.xlu0 %601
    %603 = vadd.xlane.f32.xlu0 %v566
    %v604 = vpop.xlane.xlu0 %603
    %605 = vadd.xlane.f32.xlu0 %v567
    %v606 = vpop.xlane.xlu0 %605
    %607 = vadd.xlane.f32.xlu0 %v568
    %v608 = vpop.xlane.xlu0 %607
    %609 = vadd.xlane.f32.xlu0 %v569
    %v610 = vpop.xlane.xlu0 %609
    %611 = vadd.xlane.f32.xlu0 %v570
    %v612 = vpop.xlane.xlu0 %611
    %613 = vadd.xlane.f32.xlu0 %v571
    %v614 = vpop.xlane.xlu0 %613
    %615 = vadd.xlane.f32.xlu0 %v572
    %v616 = vpop.xlane.xlu0 %615
    %617 = vadd.xlane.f32.xlu0 %v573
    %v618 = vpop.xlane.xlu0 %617
    %619 = vadd.xlane.f32.xlu0 %v574
    %v620 = vpop.xlane.xlu0 %619
    %621 = vadd.xlane.f32.xlu0 %v575
    %v622 = vpop.xlane.xlu0 %621
    %623 = vadd.xlane.f32.xlu0 %v576
    %v624 = vpop.xlane.xlu0 %623
    %625 = vadd.xlane.f32.xlu0 %v577
    %v626 = vpop.xlane.xlu0 %625
    %627 = vadd.xlane.f32.xlu0 %v578
    %v628 = vpop.xlane.xlu0 %627
    %629 = vadd.xlane.f32.xlu0 %v579
    %v630 = vpop.xlane.xlu0 %629
    %631 = vadd.xlane.f32.xlu0 %v580
    %v632 = vpop.xlane.xlu0 %631
    %633 = vadd.xlane.f32.xlu0 %v581
    %v634 = vpop.xlane.xlu0 %633
    %635 = vadd.xlane.f32.xlu0 %v582
    %v636 = vpop.xlane.xlu0 %635
    %637 = vadd.xlane.f32.xlu0 %v583
    %v638 = vpop.xlane.xlu0 %637
    %639 = vadd.xlane.f32.xlu0 %v584
    %v640 = vpop.xlane.xlu0 %639
    %641 = vadd.xlane.f32.xlu0 %v585
    %v642 = vpop.xlane.xlu0 %641
    %643 = vadd.xlane.f32.xlu0 %v586
    %v644 = vpop.xlane.xlu0 %643
    %645 = vadd.xlane.f32.xlu0 %v587
    %v646 = vpop.xlane.xlu0 %645
    %647 = vadd.xlane.f32.xlu0 %v588
    %v648 = vpop.xlane.xlu0 %647
    %649 = vadd.xlane.f32.xlu0 %v589
    %v650 = vpop.xlane.xlu0 %649
    %651 = vadd.xlane.f32.xlu0 %v590
    %v652 = vpop.xlane.xlu0 %651
    %653 = vadd.xlane.f32.xlu0 %v591
    %v654 = vpop.xlane.xlu0 %653
    %655 = vadd.xlane.f32.xlu0 %v592
    %v656 = vpop.xlane.xlu0 %655
    %vm657 = vcmask 7168
    %658 = vst.msk [vmem:[%s5] sm:$0xff] %vm657, %v594
    %659 = vst.msk [vmem:[%s5 + $0x8] sm:$0xff] %vm657, %v596
    %660 = vst.msk [vmem:[%s5 + $0x10] sm:$0xff] %vm657, %v598
    %661 = vst.msk [vmem:[%s5 + $0x18] sm:$0xff] %vm657, %v600
    %662 = vst.msk [vmem:[%s5 + $0x20] sm:$0xff] %vm657, %v602
    %663 = vst.msk [vmem:[%s5 + $0x28] sm:$0xff] %vm657, %v604
    %664 = vst.msk [vmem:[%s5 + $0x30] sm:$0xff] %vm657, %v606
    %665 = vst.msk [vmem:[%s5 + $0x38] sm:$0xff] %vm657, %v608
    %666 = vst.msk [vmem:[%s5 + $0x40] sm:$0xff] %vm657, %v610
    %667 = vst.msk [vmem:[%s5 + $0x48] sm:$0xff] %vm657, %v612
    %668 = vst.msk [vmem:[%s5 + $0x50] sm:$0xff] %vm657, %v614
    %669 = vst.msk [vmem:[%s5 + $0x58] sm:$0xff] %vm657, %v616
    %670 = vst.msk [vmem:[%s5 + $0x60] sm:$0xff] %vm657, %v618
    %671 = vst.msk [vmem:[%s5 + $0x68] sm:$0xff] %vm657, %v620
    %672 = vst.msk [vmem:[%s5 + $0x70] sm:$0xff] %vm657, %v622
    %673 = vst.msk [vmem:[%s5 + $0x78] sm:$0xff] %vm657, %v624
    %674 = vst.msk [vmem:[%s5 + $0x80] sm:$0xff] %vm657, %v626
    %675 = vst.msk [vmem:[%s5 + $0x88] sm:$0xff] %vm657, %v628
    %676 = vst.msk [vmem:[%s5 + $0x90] sm:$0xff] %vm657, %v630
    %677 = vst.msk [vmem:[%s5 + $0x98] sm:$0xff] %vm657, %v632
    %678 = vst.msk [vmem:[%s5 + $0xa0] sm:$0xff] %vm657, %v634
    %679 = vst.msk [vmem:[%s5 + $0xa8] sm:$0xff] %vm657, %v636
    %680 = vst.msk [vmem:[%s5 + $0xb0] sm:$0xff] %vm657, %v638
    %681 = vst.msk [vmem:[%s5 + $0xb8] sm:$0xff] %vm657, %v640
    %682 = vst.msk [vmem:[%s5 + $0xc0] sm:$0xff] %vm657, %v642
    %683 = vst.msk [vmem:[%s5 + $0xc8] sm:$0xff] %vm657, %v644
    %684 = vst.msk [vmem:[%s5 + $0xd0] sm:$0xff] %vm657, %v646
    %685 = vst.msk [vmem:[%s5 + $0xd8] sm:$0xff] %vm657, %v648
    %686 = vst.msk [vmem:[%s5 + $0xe0] sm:$0xff] %vm657, %v650
    %687 = vst.msk [vmem:[%s5 + $0xe8] sm:$0xff] %vm657, %v652
    %688 = vst.msk [vmem:[%s5 + $0xf0] sm:$0xff] %vm657, %v654
    %689 = vst.msk [vmem:[%s5 + $0xf8] sm:$0xff] %vm657, %v656
    %v690 = vld [vmem:[%s2] sm:$0x3]
    %v691 = vlaneseq
    %v692 = vshrl.u32 %v691, 7
    %v693 = vadd.s32 %v692, 8
    %v694 = vadd.s32 %v692, 16
    %v695 = vadd.s32 %v692, 24
    %v696 = vadd.s32 %v692, 32
    %v697 = vadd.s32 %v692, 40
    %v698 = vadd.s32 %v692, 48
    %v699 = vadd.s32 %v692, 56
    %v700 = vadd.s32 %v692, 64
    %v701 = vadd.s32 %v692, 72
    %v702 = vadd.s32 %v692, 80
    %v703 = vadd.s32 %v692, 88
    %v704 = vadd.s32 %v692, 96
    %v705 = vadd.s32 %v692, 104
    %v706 = vadd.s32 %v692, 112
    %v707 = vadd.s32 %v692, 120
    %v708 = vlaneseq
    %v709 = vshrl.u32 %v708, 7
    %v710 = vsub.s32 0, %v709
    %v711 = vrot.slane %v690, %v710
    %v712 = vlaneseq
    %v713 = vshrl.u32 %v712, 7
    %v714 = vsub.s32 1, %v713
    %v715 = vrot.slane %v690, %v714
    %vm716 = vcmp.eq.s32.totalorder %v692, %v711
    %vm717 = vcmp.eq.s32.totalorder %v692, %v715
    %vm718 = vcmp.eq.s32.totalorder %v693, %v711
    %vm719 = vcmp.eq.s32.totalorder %v693, %v715
    %vm720 = vcmp.eq.s32.totalorder %v694, %v711
    %vm721 = vcmp.eq.s32.totalorder %v694, %v715
    %vm722 = vcmp.eq.s32.totalorder %v695, %v711
    %vm723 = vcmp.eq.s32.totalorder %v695, %v715
    %vm724 = vcmp.eq.s32.totalorder %v696, %v711
    %vm725 = vcmp.eq.s32.totalorder %v696, %v715
    %vm726 = vcmp.eq.s32.totalorder %v697, %v711
    %vm727 = vcmp.eq.s32.totalorder %v697, %v715
    %vm728 = vcmp.eq.s32.totalorder %v698, %v711
    %vm729 = vcmp.eq.s32.totalorder %v698, %v715
    %vm730 = vcmp.eq.s32.totalorder %v699, %v711
    %vm731 = vcmp.eq.s32.totalorder %v699, %v715
    %vm732 = vcmp.eq.s32.totalorder %v700, %v711
    %vm733 = vcmp.eq.s32.totalorder %v700, %v715
    %vm734 = vcmp.eq.s32.totalorder %v701, %v711
    %vm735 = vcmp.eq.s32.totalorder %v701, %v715
    %vm736 = vcmp.eq.s32.totalorder %v702, %v711
    %vm737 = vcmp.eq.s32.totalorder %v702, %v715
    %vm738 = vcmp.eq.s32.totalorder %v703, %v711
    %vm739 = vcmp.eq.s32.totalorder %v703, %v715
    %vm740 = vcmp.eq.s32.totalorder %v704, %v711
    %vm741 = vcmp.eq.s32.totalorder %v704, %v715
    %vm742 = vcmp.eq.s32.totalorder %v705, %v711
    %vm743 = vcmp.eq.s32.totalorder %v705, %v715
    %vm744 = vcmp.eq.s32.totalorder %v706, %v711
    %vm745 = vcmp.eq.s32.totalorder %v706, %v715
    %vm746 = vcmp.eq.s32.totalorder %v707, %v711
    %vm747 = vcmp.eq.s32.totalorder %v707, %v715
    %v748 = vsel %vm716, 1, 0
    %v749 = vsel %vm717, 1, 0
    %v750 = vsel %vm718, 1, 0
    %v751 = vsel %vm719, 1, 0
    %v752 = vsel %vm720, 1, 0
    %v753 = vsel %vm721, 1, 0
    %v754 = vsel %vm722, 1, 0
    %v755 = vsel %vm723, 1, 0
    %v756 = vsel %vm724, 1, 0
    %v757 = vsel %vm725, 1, 0
    %v758 = vsel %vm726, 1, 0
    %v759 = vsel %vm727, 1, 0
    %v760 = vsel %vm728, 1, 0
    %v761 = vsel %vm729, 1, 0
    %v762 = vsel %vm730, 1, 0
    %v763 = vsel %vm731, 1, 0
    %v764 = vsel %vm732, 1, 0
    %v765 = vsel %vm733, 1, 0
    %v766 = vsel %vm734, 1, 0
    %v767 = vsel %vm735, 1, 0
    %v768 = vsel %vm736, 1, 0
    %v769 = vsel %vm737, 1, 0
    %v770 = vsel %vm738, 1, 0
    %v771 = vsel %vm739, 1, 0
    %v772 = vsel %vm740, 1, 0
    %v773 = vsel %vm741, 1, 0
    %v774 = vsel %vm742, 1, 0
    %v775 = vsel %vm743, 1, 0
    %v776 = vsel %vm744, 1, 0
    %v777 = vsel %vm745, 1, 0
    %v778 = vsel %vm746, 1, 0
    %v779 = vsel %vm747, 1, 0
    %v780 = vcvt.s32.f32 %v748
    %v781 = vcvt.s32.f32 %v749
    %v782 = vcvt.s32.f32 %v750
    %v783 = vcvt.s32.f32 %v751
    %v784 = vcvt.s32.f32 %v752
    %v785 = vcvt.s32.f32 %v753
    %v786 = vcvt.s32.f32 %v754
    %v787 = vcvt.s32.f32 %v755
    %v788 = vcvt.s32.f32 %v756
    %v789 = vcvt.s32.f32 %v757
    %v790 = vcvt.s32.f32 %v758
    %v791 = vcvt.s32.f32 %v759
    %v792 = vcvt.s32.f32 %v760
    %v793 = vcvt.s32.f32 %v761
    %v794 = vcvt.s32.f32 %v762
    %v795 = vcvt.s32.f32 %v763
    %v796 = vcvt.s32.f32 %v764
    %v797 = vcvt.s32.f32 %v765
    %v798 = vcvt.s32.f32 %v766
    %v799 = vcvt.s32.f32 %v767
    %v800 = vcvt.s32.f32 %v768
    %v801 = vcvt.s32.f32 %v769
    %v802 = vcvt.s32.f32 %v770
    %v803 = vcvt.s32.f32 %v771
    %v804 = vcvt.s32.f32 %v772
    %v805 = vcvt.s32.f32 %v773
    %v806 = vcvt.s32.f32 %v774
    %v807 = vcvt.s32.f32 %v775
    %v808 = vcvt.s32.f32 %v776
    %v809 = vcvt.s32.f32 %v777
    %v810 = vcvt.s32.f32 %v778
    %v811 = vcvt.s32.f32 %v779
    %v812 = vpack.c.bf16 %v782, %v780
    %v813 = vpack.c.bf16 %v783, %v781
    %v814 = vpack.c.bf16 %v786, %v784
    %v815 = vpack.c.bf16 %v787, %v785
    %v816 = vpack.c.bf16 %v790, %v788
    %v817 = vpack.c.bf16 %v791, %v789
    %v818 = vpack.c.bf16 %v794, %v792
    %v819 = vpack.c.bf16 %v795, %v793
    %v820 = vpack.c.bf16 %v798, %v796
    %v821 = vpack.c.bf16 %v799, %v797
    %v822 = vpack.c.bf16 %v802, %v800
    %v823 = vpack.c.bf16 %v803, %v801
    %v824 = vpack.c.bf16 %v806, %v804
    %v825 = vpack.c.bf16 %v807, %v805
    %v826 = vpack.c.bf16 %v810, %v808
    %v827 = vpack.c.bf16 %v811, %v809
    %828 = vmatprep.subr.bf16.mxu0 0
    %829 = vmatpush1.bf16.msra.mxu0 %v408
    %830 = vmatprep.subr.bf16.mxu0 0
    %831 = vmatpush1.bf16.msra.mxu0 %v407
    %832 = vmatprep.subr.bf16.mxu0 0
    %833 = vmatpush1.bf16.msra.mxu0 %v406
    %834 = vmatprep.subr.bf16.mxu0 0
    %835 = vmatpush1.bf16.msra.mxu0 %v405
    %836 = vmatprep.subr.bf16.mxu0 0
    %837 = vmatpush1.bf16.msra.mxu0 %v404
    %838 = vmatprep.subr.bf16.mxu0 0
    %839 = vmatpush1.bf16.msra.mxu0 %v403
    %840 = vmatprep.subr.bf16.mxu0 0
    %841 = vmatpush1.bf16.msra.mxu0 %v402
    %842 = vmatprep.subr.bf16.mxu0 0
    %843 = vmatpush1.bf16.msra.mxu0 %v401
    %844 = vmatprep.subr.bf16.mxu0 0
    %845 = vmatpush2.bf16.msra.mxu0 %v416
    %846 = vmatprep.subr.bf16.mxu0 0
    %847 = vmatpush2.bf16.msra.mxu0 %v415
    %848 = vmatprep.subr.bf16.mxu0 0
    %849 = vmatpush2.bf16.msra.mxu0 %v414
    %850 = vmatprep.subr.bf16.mxu0 0
    %851 = vmatpush2.bf16.msra.mxu0 %v413
    %852 = vmatprep.subr.bf16.mxu0 0
    %853 = vmatpush2.bf16.msra.mxu0 %v412
    %854 = vmatprep.subr.bf16.mxu0 0
    %855 = vmatpush2.bf16.msra.mxu0 %v411
    %856 = vmatprep.subr.bf16.mxu0 0
    %857 = vmatpush2.bf16.msra.mxu0 %v410
    %858 = vmatprep.subr.bf16.mxu0 0
    %859 = vmatpush2.bf16.msra.mxu0 %v409
    %860 = vmatprep.mubr.bf16.mxu0 %v813
    %861 = vmatmul.mubr.bf16.gmra.mxu0 %v812
    %v862 = vpop.f32.mrf.mxu0
    %v863 = vadd.f32 0.0, %v862
    %v864 = vpop.f32.mrf.mxu0
    %v865 = vpop.f32.mrf.mxu0
    %v866 = vadd.f32 0.0, %v865
    %v867 = vpop.f32.mrf.mxu0
    %868 = vmatprep.mubr.bf16.mxu0 %v815
    %869 = vmatmul.mubr.bf16.gmra.mxu0 %v814
    %v870 = vpop.f32.mrf.mxu0
    %v871 = vadd.f32 0.0, %v870
    %v872 = vpop.f32.mrf.mxu0
    %v873 = vpop.f32.mrf.mxu0
    %v874 = vadd.f32 0.0, %v873
    %v875 = vpop.f32.mrf.mxu0
    %876 = vmatprep.mubr.bf16.mxu0 %v817
    %877 = vmatmul.mubr.bf16.gmra.mxu0 %v816
    %v878 = vpop.f32.mrf.mxu0
    %v879 = vadd.f32 0.0, %v878
    %v880 = vpop.f32.mrf.mxu0
    %v881 = vpop.f32.mrf.mxu0
    %v882 = vadd.f32 0.0, %v881
    %v883 = vpop.f32.mrf.mxu0
    %884 = vmatprep.mubr.bf16.mxu0 %v819
    %885 = vmatmul.mubr.bf16.gmra.mxu0 %v818
    %v886 = vpop.f32.mrf.mxu0
    %v887 = vadd.f32 0.0, %v886
    %v888 = vpop.f32.mrf.mxu0
    %v889 = vpop.f32.mrf.mxu0
    %v890 = vadd.f32 0.0, %v889
    %v891 = vpop.f32.mrf.mxu0
    %892 = vmatprep.mubr.bf16.mxu0 %v821
    %893 = vmatmul.mubr.bf16.gmra.mxu0 %v820
    %v894 = vpop.f32.mrf.mxu0
    %v895 = vadd.f32 0.0, %v894
    %v896 = vpop.f32.mrf.mxu0
    %v897 = vpop.f32.mrf.mxu0
    %v898 = vadd.f32 0.0, %v897
    %v899 = vpop.f32.mrf.mxu0
    %900 = vmatprep.mubr.bf16.mxu0 %v823
    %901 = vmatmul.mubr.bf16.gmra.mxu0 %v822
    %v902 = vpop.f32.mrf.mxu0
    %v903 = vadd.f32 0.0, %v902
    %v904 = vpop.f32.mrf.mxu0
    %v905 = vpop.f32.mrf.mxu0
    %v906 = vadd.f32 0.0, %v905
    %v907 = vpop.f32.mrf.mxu0
    %908 = vmatprep.mubr.bf16.mxu0 %v825
    %909 = vmatmul.mubr.bf16.gmra.mxu0 %v824
    %v910 = vpop.f32.mrf.mxu0
    %v911 = vadd.f32 0.0, %v910
    %v912 = vpop.f32.mrf.mxu0
    %v913 = vpop.f32.mrf.mxu0
    %v914 = vadd.f32 0.0, %v913
    %v915 = vpop.f32.mrf.mxu0
    %916 = vmatprep.mubr.bf16.mxu0 %v827
    %917 = vmatmul.mubr.bf16.gmra.mxu0 %v826
    %v918 = vpop.f32.mrf.mxu0
    %v919 = vadd.f32 0.0, %v918
    %v920 = vpop.f32.mrf.mxu0
    %v921 = vpop.f32.mrf.mxu0
    %v922 = vadd.f32 0.0, %v921
    %v923 = vpop.f32.mrf.mxu0
    %924 = vdwg.mxu0
    %925 = vst [vmem:[#allocation8] sm:$0xff] %v863
    %926 = vst [vmem:[#allocation8 + $0x8] sm:$0xff] %v866
    %927 = vst [vmem:[#allocation8 + $0x10] sm:$0xff] %v871
    %928 = vst [vmem:[#allocation8 + $0x18] sm:$0xff] %v874
    %929 = vst [vmem:[#allocation8 + $0x20] sm:$0xff] %v879
    %930 = vst [vmem:[#allocation8 + $0x28] sm:$0xff] %v882
    %931 = vst [vmem:[#allocation8 + $0x30] sm:$0xff] %v887
    %932 = vst [vmem:[#allocation8 + $0x38] sm:$0xff] %v890
    %933 = vst [vmem:[#allocation8 + $0x40] sm:$0xff] %v895
    %934 = vst [vmem:[#allocation8 + $0x48] sm:$0xff] %v898
    %935 = vst [vmem:[#allocation8 + $0x50] sm:$0xff] %v903
    %936 = vst [vmem:[#allocation8 + $0x58] sm:$0xff] %v906
    %937 = vst [vmem:[#allocation8 + $0x60] sm:$0xff] %v911
    %938 = vst [vmem:[#allocation8 + $0x68] sm:$0xff] %v914
    %939 = vst [vmem:[#allocation8 + $0x70] sm:$0xff] %v919
    %940 = vst [vmem:[#allocation8 + $0x78] sm:$0xff] %v922
    // Predicated region
    $region22: #{tpu_custom_call.1} parent=1 // pred_check
      _
    $region23: #{tpu_custom_call.1} parent=1 // pred_check_branch
      %942 = sbr.rel (0) target = $region25
    $region24: #{tpu_custom_call.1} parent=1 // pred_region
      %s944 = ssub.s32 2048, 2048
      %945 = vsyncadd [#allocation4], %s944
      %s946 = sshll.u32 [#allocation7], 4
      %s947 = int_to_ptr.vmem [resolvable:$true] %s946
      %952 = dma.vmem_to_hbm [thread:$0]  %s947, 2048, %s3, [#allocation4], 64, 64, 4
    $region25: #{tpu_custom_call.1} parent=1 // pred_fallthru
      _
    // Predicated region
    $region26: #{tpu_custom_call.1} parent=1 // pred_check
      _
    $region27: #{tpu_custom_call.1} parent=1 // pred_check_branch
      %954 = sbr.rel (0) target = $region29
    $region28: #{tpu_custom_call.1} parent=1 // pred_region
      %s956 = ssub.s32 2048, 2048
      %957 = vsyncadd [#allocation9], %s956
      %s958 = sshll.u32 [#allocation8], 4
      %s959 = int_to_ptr.vmem [resolvable:$true] %s958
      %964 = dma.vmem_to_hbm [thread:$0]  %s959, 2048, %s4, [#allocation9], 128, 128, 8
    $region29: #{tpu_custom_call.1} parent=1 // pred_fallthru
      _
    // Predicated region
    $region30: #{tpu_custom_call.1} parent=1 // pred_check
      _
    $region31: #{tpu_custom_call.1} parent=1 // pred_check_branch
      %966 = sbr.rel (0) target = $region33
    $region32: #{tpu_custom_call.1} parent=1 // pred_region
      _
    $region33: #{tpu_custom_call.1} parent=1 // pred_fallthru
      _
    // Predicated region
    $region34: #{tpu_custom_call.1} parent=1 // pred_check
      _
    $region35: #{tpu_custom_call.1} parent=1 // pred_check_branch
      %968 = sbr.rel (0) target = $region37
    $region36: #{tpu_custom_call.1} parent=1 // pred_region
      %969 = dma.done [#allocation4], 2048
    $region37: #{tpu_custom_call.1} parent=1 // pred_fallthru
      _
    // Predicated region
    $region38: #{tpu_custom_call.1} parent=1 // pred_check
      _
    $region39: #{tpu_custom_call.1} parent=1 // pred_check_branch
      %971 = sbr.rel (0) target = $region41
    $region40: #{tpu_custom_call.1} parent=1 // pred_region
      %972 = dma.done [#allocation9], 2048
    $region41: #{tpu_custom_call.1} parent=1 // pred_fallthru
      _
    // Predicated region
    $region42: #{tpu_custom_call.1} parent=1 // pred_check
      _
    $region43: #{tpu_custom_call.1} parent=1 // pred_check_branch
      %974 = sbr.rel (0) target = $region45
    $region44: #{tpu_custom_call.1} parent=1 // pred_region
      _
    $region45: #{tpu_custom_call.1} parent=1 // pred_fallthru
      _
    %975 = vsyncpa [#allocation3], 1
    %976 = vsyncpa [#allocation6], 1
    %977 = vsyncpa [#allocation4], 1
    %978 = vsyncpa [#allocation9], 1

// kernel: tpu_custom_call.1
$region0: #{tpu_custom_call.1}
  #allocation0 [shape = 'u32[]', space=smem, size = 0x4, offset = 0x4, fixed_abs, tag = 'smem constant byte address 0x4 - core index']
  #allocation1 [shape = 'u32[144,128]{1,0:T(1,128)}', space=vmem, size = 0x12000, scoped, tag = 'internal scratch']
  %s0 = inlined_call_operand.hbm [shape: bf16[256,128], index: 0, kind: input, shape index: {}]
  %s1 = inlined_call_operand.hbm [shape: bf16[128,128], index: 1, kind: input, shape index: {}]
  %s2 = inlined_call_operand.vmem [shape: s32[1,256], index: 2, kind: input, shape index: {}]
  %s3 = inlined_call_operand.hbm [shape: bf16[256,128], index: 3, kind: output, shape index: {0}]
  %s4 = inlined_call_operand.hbm [shape: f32[1,128,128], index: 4, kind: output, shape index: {1}]
  %s5 = inlined_call_operand.vmem [shape: f32[256,1], index: 5, kind: output, shape index: {2}]
  %6 = xla_tuple %s3, %s4, %s5
  %s7 = sld [smem:[#allocation0]]
  $region46: #{tpu_custom_call.1} parent=0
    _
  %s9 = ssub.s32 1, %s7
  %s10 = scalar_select 0, %s9, %s7
  $region1: #{tpu_custom_call.1} parent=0
    #allocation2 [shape = 'u8[65536]{0}', space=vmem, size = 0x10000, scoped, tag = 'input window, operand 0, single buffered']
    #allocation3 [shape = 's32[1]{0}', space=sflag, size = 0x4, scoped, tag = 'scoped memory for tpu_custom_call.1']
    #allocation4 [shape = 's32[1]{0}', space=sflag, size = 0x4, scoped, tag = 'scoped memory for tpu_custom_call.1']
    #allocation5 [shape = 'u8[32768]{0}', space=vmem, size = 0x8000, scoped, tag = 'input window, operand 1, single buffered']
    #allocation6 [shape = 's32[1]{0}', space=sflag, size = 0x4, scoped, tag = 'scoped memory for tpu_custom_call.1']
    #allocation7 [shape = 'u8[65536]{0}', space=vmem, size = 0x10000, scoped, tag = 'output window, operand 0, single buffered']
    #allocation8 [shape = 'u8[65536]{0}', space=vmem, size = 0x10000, scoped, tag = 'output window, operand 1, single buffered']
    #allocation9 [shape = 's32[1]{0}', space=sflag, size = 0x4, scoped, tag = 'scoped memory for tpu_custom_call.1']
    %11 = vsyncpa [#allocation3], 0
    %12 = vsyncpa [#allocation6], 0
    %13 = vsyncpa [#allocation4], 0
    %14 = vsyncpa [#allocation9], 0
    // Predicated region
    $region2: #{tpu_custom_call.1} parent=1 // pred_check
      _
    $region3: #{tpu_custom_call.1} parent=1 // pred_check_branch
      %16 = sbr.rel (0) target = $region5
    $region4: #{tpu_custom_call.1} parent=1 // pred_region
      %s18 = ssub.s32 2048, 2048
      %19 = vsyncadd [#allocation3], %s18
      %s20 = sshll.u32 [#allocation2], 4
      %s21 = int_to_ptr.vmem [resolvable:$true] %s20
      %26 = dma.hbm_to_vmem [thread:$0]  %s0, 2048, %s21, [#allocation3], 64, 64, 4
    $region5: #{tpu_custom_call.1} parent=1 // pred_fallthru
      _
    // Predicated region
    $region6: #{tpu_custom_call.1} parent=1 // pred_check
      _
    $region7: #{tpu_custom_call.1} parent=1 // pred_check_branch
      %28 = sbr.rel (0) target = $region9
    $region8: #{tpu_custom_call.1} parent=1 // pred_region
      %s30 = ssub.s32 1024, 1024
      %31 = vsyncadd [#allocation6], %s30
      %s32 = sshll.u32 [#allocation5], 4
      %s33 = int_to_ptr.vmem [resolvable:$true] %s32
      %38 = dma.hbm_to_vmem [thread:$0]  %s1, 1024, %s33, [#allocation6], 64, 64, 4
    $region9: #{tpu_custom_call.1} parent=1 // pred_fallthru
      _
    // Predicated region
    $region10: #{tpu_custom_call.1} parent=1 // pred_check
      _
    $region11: #{tpu_custom_call.1} parent=1 // pred_check_branch
      %40 = sbr.rel (0) target = $region13
    $region12: #{tpu_custom_call.1} parent=1 // pred_region
      _
    $region13: #{tpu_custom_call.1} parent=1 // pred_fallthru
      _
    // Predicated region
    $region14: #{tpu_custom_call.1} parent=1 // pred_check
      _
    $region15: #{tpu_custom_call.1} parent=1 // pred_check_branch
      %42 = sbr.rel (0) target = $region17
    $region16: #{tpu_custom_call.1} parent=1 // pred_region
      %43 = dma.done [#allocation3], 2048
    $region17: #{tpu_custom_call.1} parent=1 // pred_fallthru
      _
    // Predicated region
    $region18: #{tpu_custom_call.1} parent=1 // pred_check
      _
    $region19: #{tpu_custom_call.1} parent=1 // pred_check_branch
      %45 = sbr.rel (0) target = $region21
    $region20: #{tpu_custom_call.1} parent=1 // pred_region
      %46 = dma.done [#allocation6], 1024
    $region21: #{tpu_custom_call.1} parent=1 // pred_fallthru
      _
    %v48 = vld [vmem:[#allocation2] sm:$0xf]
    %v49 = vld [vmem:[#allocation2 + $0x4] sm:$0xf]
    %v50 = vld [vmem:[#allocation2 + $0x8] sm:$0xf]
    %v51 = vld [vmem:[#allocation2 + $0xc] sm:$0xf]
    %v52 = vld [vmem:[#allocation2 + $0x10] sm:$0xf]
    %v53 = vld [vmem:[#allocation2 + $0x14] sm:$0xf]
    %v54 = vld [vmem:[#allocation2 + $0x18] sm:$0xf]
    %v55 = vld [vmem:[#allocation2 + $0x1c] sm:$0xf]
    %v56 = vld [vmem:[#allocation2 + $0x20] sm:$0xf]
    %v57 = vld [vmem:[#allocation2 + $0x24] sm:$0xf]
    %v58 = vld [vmem:[#allocation2 + $0x28] sm:$0xf]
    %v59 = vld [vmem:[#allocation2 + $0x2c] sm:$0xf]
    %v60 = vld [vmem:[#allocation2 + $0x30] sm:$0xf]
    %v61 = vld [vmem:[#allocation2 + $0x34] sm:$0xf]
    %v62 = vld [vmem:[#allocation2 + $0x38] sm:$0xf]
    %v63 = vld [vmem:[#allocation2 + $0x3c] sm:$0xf]
    %v64 = vld [vmem:[#allocation2 + $0x40] sm:$0xf]
    %v65 = vld [vmem:[#allocation2 + $0x44] sm:$0xf]
    %v66 = vld [vmem:[#allocation2 + $0x48] sm:$0xf]
    %v67 = vld [vmem:[#allocation2 + $0x4c] sm:$0xf]
    %v68 = vld [vmem:[#allocation2 + $0x50] sm:$0xf]
    %v69 = vld [vmem:[#allocation2 + $0x54] sm:$0xf]
    %v70 = vld [vmem:[#allocation2 + $0x58] sm:$0xf]
    %v71 = vld [vmem:[#allocation2 + $0x5c] sm:$0xf]
    %v72 = vld [vmem:[#allocation2 + $0x60] sm:$0xf]
    %v73 = vld [vmem:[#allocation2 + $0x64] sm:$0xf]
    %v74 = vld [vmem:[#allocation2 + $0x68] sm:$0xf]
    %v75 = vld [vmem:[#allocation2 + $0x6c] sm:$0xf]
    %v76 = vld [vmem:[#allocation2 + $0x70] sm:$0xf]
    %v77 = vld [vmem:[#allocation2 + $0x74] sm:$0xf]
    %v78 = vld [vmem:[#allocation2 + $0x78] sm:$0xf]
    %v79 = vld [vmem:[#allocation2 + $0x7c] sm:$0xf]
    %v80 = vld [vmem:[#allocation5] sm:$0xf]
    %v81 = vld [vmem:[#allocation5 + $0x4] sm:$0xf]
    %v82 = vld [vmem:[#allocation5 + $0x8] sm:$0xf]
    %v83 = vld [vmem:[#allocation5 + $0xc] sm:$0xf]
    %v84 = vld [vmem:[#allocation5 + $0x10] sm:$0xf]
    %v85 = vld [vmem:[#allocation5 + $0x14] sm:$0xf]
    %v86 = vld [vmem:[#allocation5 + $0x18] sm:$0xf]
    %v87 = vld [vmem:[#allocation5 + $0x1c] sm:$0xf]
    %v88 = vld [vmem:[#allocation5 + $0x20] sm:$0xf]
    %v89 = vld [vmem:[#allocation5 + $0x24] sm:$0xf]
    %v90 = vld [vmem:[#allocation5 + $0x28] sm:$0xf]
    %v91 = vld [vmem:[#allocation5 + $0x2c] sm:$0xf]
    %v92 = vld [vmem:[#allocation5 + $0x30] sm:$0xf]
    %v93 = vld [vmem:[#allocation5 + $0x34] sm:$0xf]
    %v94 = vld [vmem:[#allocation5 + $0x38] sm:$0xf]
    %v95 = vld [vmem:[#allocation5 + $0x3c] sm:$0xf]
    %v128 = vunpack.c.l.b16 %v48
    %v129 = vunpack.c.l.b16 %v49
    %v130 = vunpack.c.l.b16 %v50
    %v131 = vunpack.c.l.b16 %v51
    %v132 = vunpack.c.l.b16 %v52
    %v133 = vunpack.c.l.b16 %v53
    %v134 = vunpack.c.l.b16 %v54
    %v135 = vunpack.c.l.b16 %v55
    %v136 = vunpack.c.l.b16 %v56
    %v137 = vunpack.c.l.b16 %v57
    %v138 = vunpack.c.l.b16 %v58
    %v139 = vunpack.c.l.b16 %v59
    %v140 = vunpack.c.l.b16 %v60
    %v141 = vunpack.c.l.b16 %v61
    %v142 = vunpack.c.l.b16 %v62
    %v143 = vunpack.c.l.b16 %v63
    %v144 = vunpack.c.l.b16 %v64
    %v145 = vunpack.c.l.b16 %v65
    %v146 = vunpack.c.l.b16 %v66
    %v147 = vunpack.c.l.b16 %v67
    %v148 = vunpack.c.l.b16 %v68
    %v149 = vunpack.c.l.b16 %v69
    %v150 = vunpack.c.l.b16 %v70
    %v151 = vunpack.c.l.b16 %v71
    %v152 = vunpack.c.l.b16 %v72
    %v153 = vunpack.c.l.b16 %v73
    %v154 = vunpack.c.l.b16 %v74
    %v155 = vunpack.c.l.b16 %v75
    %v156 = vunpack.c.l.b16 %v76
    %v157 = vunpack.c.l.b16 %v77
    %v158 = vunpack.c.l.b16 %v78
    %v159 = vunpack.c.l.b16 %v79
    %v160 = vpack.c.b16 %v129, %v128
    %v161 = vpack.c.b16 %v131, %v130
    %v162 = vpack.c.b16 %v133, %v132
    %v163 = vpack.c.b16 %v135, %v134
    %v164 = vpack.c.b16 %v137, %v136
    %v165 = vpack.c.b16 %v139, %v138
    %v166 = vpack.c.b16 %v141, %v140
    %v167 = vpack.c.b16 %v143, %v142
    %v168 = vpack.c.b16 %v145, %v144
    %v169 = vpack.c.b16 %v147, %v146
    %v170 = vpack.c.b16 %v149, %v148
    %v171 = vpack.c.b16 %v151, %v150
    %v172 = vpack.c.b16 %v153, %v152
    %v173 = vpack.c.b16 %v155, %v154
    %v174 = vpack.c.b16 %v157, %v156
    %v175 = vpack.c.b16 %v159, %v158
    %v208 = vunpack.c.l.b16 %v80
    %v209 = vunpack.c.l.b16 %v81
    %v210 = vunpack.c.l.b16 %v82
    %v211 = vunpack.c.l.b16 %v83
    %v212 = vunpack.c.l.b16 %v84
    %v213 = vunpack.c.l.b16 %v85
    %v214 = vunpack.c.l.b16 %v86
    %v215 = vunpack.c.l.b16 %v87
    %v216 = vunpack.c.l.b16 %v88
    %v217 = vunpack.c.l.b16 %v89
    %v218 = vunpack.c.l.b16 %v90
    %v219 = vunpack.c.l.b16 %v91
    %v220 = vunpack.c.l.b16 %v92
    %v221 = vunpack.c.l.b16 %v93
    %v222 = vunpack.c.l.b16 %v94
    %v223 = vunpack.c.l.b16 %v95
    %v224 = vpack.c.b16 %v209, %v208
    %v225 = vpack.c.b16 %v211, %v210
    %v226 = vpack.c.b16 %v213, %v212
    %v227 = vpack.c.b16 %v215, %v214
    %v228 = vpack.c.b16 %v217, %v216
    %v229 = vpack.c.b16 %v219, %v218
    %v230 = vpack.c.b16 %v221, %v220
    %v231 = vpack.c.b16 %v223, %v222
    %240 = vmatprep.subr.bf16.mxu0 0
    %241 = vmatpush1.bf16.msra.mxu0 %v231
    %242 = vmatprep.subr.bf16.mxu0 0
    %243 = vmatpush1.bf16.msra.mxu0 %v230
    %244 = vmatprep.subr.bf16.mxu0 0
    %245 = vmatpush1.bf16.msra.mxu0 %v229
    %246 = vmatprep.subr.bf16.mxu0 0
    %247 = vmatpush1.bf16.msra.mxu0 %v228
    %248 = vmatprep.subr.bf16.mxu0 0
    %249 = vmatpush1.bf16.msra.mxu0 %v227
    %250 = vmatprep.subr.bf16.mxu0 0
    %251 = vmatpush1.bf16.msra.mxu0 %v226
    %252 = vmatprep.subr.bf16.mxu0 0
    %253 = vmatpush1.bf16.msra.mxu0 %v225
    %254 = vmatprep.subr.bf16.mxu0 0
    %255 = vmatpush1.bf16.msra.mxu0 %v224
    %256 = vmatprep.subr.bf16.mxu0 0
    %257 = vmatpush2.bf16.msra.mxu0 0
    %258 = vmatprep.subr.bf16.mxu0 0
    %259 = vmatpush2.bf16.msra.mxu0 0
    %260 = vmatprep.subr.bf16.mxu0 0
    %261 = vmatpush2.bf16.msra.mxu0 0
    %262 = vmatprep.subr.bf16.mxu0 0
    %263 = vmatpush2.bf16.msra.mxu0 0
    %264 = vmatprep.subr.bf16.mxu0 0
    %265 = vmatpush2.bf16.msra.mxu0 0
    %266 = vmatprep.subr.bf16.mxu0 0
    %267 = vmatpush2.bf16.msra.mxu0 0
    %268 = vmatprep.subr.bf16.mxu0 0
    %269 = vmatpush2.bf16.msra.mxu0 0
    %270 = vmatprep.subr.bf16.mxu0 0
    %271 = vmatpush2.bf16.msra.mxu0 0
    %272 = vmatprep.mubr.bf16.mxu0 0
    %273 = vmatmul.mubr.bf16.gmra.mxu0 %v160
    %v274 = vpop.f32.mrf.mxu0
    %v275 = vadd.f32 0.0, %v274
    %v276 = vpop.f32.mrf.mxu0
    %v277 = vpop.f32.mrf.mxu0
    %v278 = vadd.f32 0.0, %v277
    %v279 = vpop.f32.mrf.mxu0
    %280 = vmatprep.mubr.bf16.mxu0 0
    %281 = vmatmul.mubr.bf16.gmra.mxu0 %v161
    %v282 = vpop.f32.mrf.mxu0
    %v283 = vadd.f32 0.0, %v282
    %v284 = vpop.f32.mrf.mxu0
    %v285 = vpop.f32.mrf.mxu0
    %v286 = vadd.f32 0.0, %v285
    %v287 = vpop.f32.mrf.mxu0
    %288 = vmatprep.mubr.bf16.mxu0 0
    %289 = vmatmul.mubr.bf16.gmra.mxu0 %v162
    %v290 = vpop.f32.mrf.mxu0
    %v291 = vadd.f32 0.0, %v290
    %v292 = vpop.f32.mrf.mxu0
    %v293 = vpop.f32.mrf.mxu0
    %v294 = vadd.f32 0.0, %v293
    %v295 = vpop.f32.mrf.mxu0
    %296 = vmatprep.mubr.bf16.mxu0 0
    %297 = vmatmul.mubr.bf16.gmra.mxu0 %v163
    %v298 = vpop.f32.mrf.mxu0
    %v299 = vadd.f32 0.0, %v298
    %v300 = vpop.f32.mrf.mxu0
    %v301 = vpop.f32.mrf.mxu0
    %v302 = vadd.f32 0.0, %v301
    %v303 = vpop.f32.mrf.mxu0
    %304 = vmatprep.mubr.bf16.mxu0 0
    %305 = vmatmul.mubr.bf16.gmra.mxu0 %v164
    %v306 = vpop.f32.mrf.mxu0
    %v307 = vadd.f32 0.0, %v306
    %v308 = vpop.f32.mrf.mxu0
    %v309 = vpop.f32.mrf.mxu0
    %v310 = vadd.f32 0.0, %v309
    %v311 = vpop.f32.mrf.mxu0
    %312 = vmatprep.mubr.bf16.mxu0 0
    %313 = vmatmul.mubr.bf16.gmra.mxu0 %v165
    %v314 = vpop.f32.mrf.mxu0
    %v315 = vadd.f32 0.0, %v314
    %v316 = vpop.f32.mrf.mxu0
    %v317 = vpop.f32.mrf.mxu0
    %v318 = vadd.f32 0.0, %v317
    %v319 = vpop.f32.mrf.mxu0
    %320 = vmatprep.mubr.bf16.mxu0 0
    %321 = vmatmul.mubr.bf16.gmra.mxu0 %v166
    %v322 = vpop.f32.mrf.mxu0
    %v323 = vadd.f32 0.0, %v322
    %v324 = vpop.f32.mrf.mxu0
    %v325 = vpop.f32.mrf.mxu0
    %v326 = vadd.f32 0.0, %v325
    %v327 = vpop.f32.mrf.mxu0
    %328 = vmatprep.mubr.bf16.mxu0 0
    %329 = vmatmul.mubr.bf16.gmra.mxu0 %v167
    %v330 = vpop.f32.mrf.mxu0
    %v331 = vadd.f32 0.0, %v330
    %v332 = vpop.f32.mrf.mxu0
    %v333 = vpop.f32.mrf.mxu0
    %v334 = vadd.f32 0.0, %v333
    %v335 = vpop.f32.mrf.mxu0
    %336 = vmatprep.mubr.bf16.mxu0 0
    %337 = vmatmul.mubr.bf16.gmra.mxu0 %v168
    %v338 = vpop.f32.mrf.mxu0
    %v339 = vadd.f32 0.0, %v338
    %v340 = vpop.f32.mrf.mxu0
    %v341 = vpop.f32.mrf.mxu0
    %v342 = vadd.f32 0.0, %v341
    %v343 = vpop.f32.mrf.mxu0
    %344 = vmatprep.mubr.bf16.mxu0 0
    %345 = vmatmul.mubr.bf16.gmra.mxu0 %v169
    %v346 = vpop.f32.mrf.mxu0
    %v347 = vadd.f32 0.0, %v346
    %v348 = vpop.f32.mrf.mxu0
    %v349 = vpop.f32.mrf.mxu0
    %v350 = vadd.f32 0.0, %v349
    %v351 = vpop.f32.mrf.mxu0
    %352 = vmatprep.mubr.bf16.mxu0 0
    %353 = vmatmul.mubr.bf16.gmra.mxu0 %v170
    %v354 = vpop.f32.mrf.mxu0
    %v355 = vadd.f32 0.0, %v354
    %v356 = vpop.f32.mrf.mxu0
    %v357 = vpop.f32.mrf.mxu0
    %v358 = vadd.f32 0.0, %v357
    %v359 = vpop.f32.mrf.mxu0
    %360 = vmatprep.mubr.bf16.mxu0 0
    %361 = vmatmul.mubr.bf16.gmra.mxu0 %v171
    %v362 = vpop.f32.mrf.mxu0
    %v363 = vadd.f32 0.0, %v362
    %v364 = vpop.f32.mrf.mxu0
    %v365 = vpop.f32.mrf.mxu0
    %v366 = vadd.f32 0.0, %v365
    %v367 = vpop.f32.mrf.mxu0
    %368 = vmatprep.mubr.bf16.mxu0 0
    %369 = vmatmul.mubr.bf16.gmra.mxu0 %v172
    %v370 = vpop.f32.mrf.mxu0
    %v371 = vadd.f32 0.0, %v370
    %v372 = vpop.f32.mrf.mxu0
    %v373 = vpop.f32.mrf.mxu0
    %v374 = vadd.f32 0.0, %v373
    %v375 = vpop.f32.mrf.mxu0
    %376 = vmatprep.mubr.bf16.mxu0 0
    %377 = vmatmul.mubr.bf16.gmra.mxu0 %v173
    %v378 = vpop.f32.mrf.mxu0
    %v379 = vadd.f32 0.0, %v378
    %v380 = vpop.f32.mrf.mxu0
    %v381 = vpop.f32.mrf.mxu0
    %v382 = vadd.f32 0.0, %v381
    %v383 = vpop.f32.mrf.mxu0
    %384 = vmatprep.mubr.bf16.mxu0 0
    %385 = vmatmul.mubr.bf16.gmra.mxu0 %v174
    %v386 = vpop.f32.mrf.mxu0
    %v387 = vadd.f32 0.0, %v386
    %v388 = vpop.f32.mrf.mxu0
    %v389 = vpop.f32.mrf.mxu0
    %v390 = vadd.f32 0.0, %v389
    %v391 = vpop.f32.mrf.mxu0
    %392 = vmatprep.mubr.bf16.mxu0 0
    %393 = vmatmul.mubr.bf16.gmra.mxu0 %v175
    %v394 = vpop.f32.mrf.mxu0
    %v395 = vadd.f32 0.0, %v394
    %v396 = vpop.f32.mrf.mxu0
    %v397 = vpop.f32.mrf.mxu0
    %v398 = vadd.f32 0.0, %v397
    %v399 = vpop.f32.mrf.mxu0
    %400 = vdwg.mxu0
    %v401 = vpack.c.bf16 %v278, %v275
    %v402 = vpack.c.bf16 %v286, %v283
    %v403 = vpack.c.bf16 %v294, %v291
    %v404 = vpack.c.bf16 %v302, %v299
    %v405 = vpack.c.bf16 %v310, %v307
    %v406 = vpack.c.bf16 %v318, %v315
    %v407 = vpack.c.bf16 %v326, %v323
    %v408 = vpack.c.bf16 %v334, %v331
    %v409 = vpack.c.bf16 %v342, %v339
    %v410 = vpack.c.bf16 %v350, %v347
    %v411 = vpack.c.bf16 %v358, %v355
    %v412 = vpack.c.bf16 %v366, %v363
    %v413 = vpack.c.bf16 %v374, %v371
    %v414 = vpack.c.bf16 %v382, %v379
    %v415 = vpack.c.bf16 %v390, %v387
    %v416 = vpack.c.bf16 %v398, %v395
    %v433 = vunpack.c.l.b16 %v401
    %v434 = vunpack.c.h.b16 %v401
    %v435 = vunpack.c.l.b16 %v402
    %v436 = vunpack.c.h.b16 %v402
    %v437 = vunpack.c.l.b16 %v403
    %v438 = vunpack.c.h.b16 %v403
    %v439 = vunpack.c.l.b16 %v404
    %v440 = vunpack.c.h.b16 %v404
    %v441 = vunpack.c.l.b16 %v405
    %v442 = vunpack.c.h.b16 %v405
    %v443 = vunpack.c.l.b16 %v406
    %v444 = vunpack.c.h.b16 %v406
    %v445 = vunpack.c.l.b16 %v407
    %v446 = vunpack.c.h.b16 %v407
    %v447 = vunpack.c.l.b16 %v408
    %v448 = vunpack.c.h.b16 %v408
    %v449 = vunpack.c.l.b16 %v409
    %v450 = vunpack.c.h.b16 %v409
    %v451 = vunpack.c.l.b16 %v410
    %v452 = vunpack.c.h.b16 %v410
    %v453 = vunpack.c.l.b16 %v411
    %v454 = vunpack.c.h.b16 %v411
    %v455 = vunpack.c.l.b16 %v412
    %v456 = vunpack.c.h.b16 %v412
    %v457 = vunpack.c.l.b16 %v413
    %v458 = vunpack.c.h.b16 %v413
    %v459 = vunpack.c.l.b16 %v414
    %v460 = vunpack.c.h.b16 %v414
    %v461 = vunpack.c.l.b16 %v415
    %v462 = vunpack.c.h.b16 %v415
    %v463 = vunpack.c.l.b16 %v416
    %v464 = vunpack.c.h.b16 %v416
    %v465 = vpack.c.b16 %v433, %v433
    %v466 = vpack.c.b16 %v434, %v434
    %v467 = vpack.c.b16 %v435, %v435
    %v468 = vpack.c.b16 %v436, %v436
    %v469 = vpack.c.b16 %v437, %v437
    %v470 = vpack.c.b16 %v438, %v438
    %v471 = vpack.c.b16 %v439, %v439
    %v472 = vpack.c.b16 %v440, %v440
    %v473 = vpack.c.b16 %v441, %v441
    %v474 = vpack.c.b16 %v442, %v442
    %v475 = vpack.c.b16 %v443, %v443
    %v476 = vpack.c.b16 %v444, %v444
    %v477 = vpack.c.b16 %v445, %v445
    %v478 = vpack.c.b16 %v446, %v446
    %v479 = vpack.c.b16 %v447, %v447
    %v480 = vpack.c.b16 %v448, %v448
    %v481 = vpack.c.b16 %v449, %v449
    %v482 = vpack.c.b16 %v450, %v450
    %v483 = vpack.c.b16 %v451, %v451
    %v484 = vpack.c.b16 %v452, %v452
    %v485 = vpack.c.b16 %v453, %v453
    %v486 = vpack.c.b16 %v454, %v454
    %v487 = vpack.c.b16 %v455, %v455
    %v488 = vpack.c.b16 %v456, %v456
    %v489 = vpack.c.b16 %v457, %v457
    %v490 = vpack.c.b16 %v458, %v458
    %v491 = vpack.c.b16 %v459, %v459
    %v492 = vpack.c.b16 %v460, %v460
    %v493 = vpack.c.b16 %v461, %v461
    %v494 = vpack.c.b16 %v462, %v462
    %v495 = vpack.c.b16 %v463, %v463
    %v496 = vpack.c.b16 %v464, %v464
    %529 = vst [vmem:[#allocation7] sm:$0xf] %v465
    %530 = vst [vmem:[#allocation7 + $0x4] sm:$0xf] %v466
    %531 = vst [vmem:[#allocation7 + $0x8] sm:$0xf] %v467
    %532 = vst [vmem:[#allocation7 + $0xc] sm:$0xf] %v468
    %533 = vst [vmem:[#allocation7 + $0x10] sm:$0xf] %v469
    %534 = vst [vmem:[#allocation7 + $0x14] sm:$0xf] %v470
    %535 = vst [vmem:[#allocation7 + $0x18] sm:$0xf] %v471
    %536 = vst [vmem:[#allocation7 + $0x1c] sm:$0xf] %v472
    %537 = vst [vmem:[#allocation7 + $0x20] sm:$0xf] %v473
    %538 = vst [vmem:[#allocation7 + $0x24] sm:$0xf] %v474
    %539 = vst [vmem:[#allocation7 + $0x28] sm:$0xf] %v475
    %540 = vst [vmem:[#allocation7 + $0x2c] sm:$0xf] %v476
    %541 = vst [vmem:[#allocation7 + $0x30] sm:$0xf] %v477
    %542 = vst [vmem:[#allocation7 + $0x34] sm:$0xf] %v478
    %543 = vst [vmem:[#allocation7 + $0x38] sm:$0xf] %v479
    %544 = vst [vmem:[#allocation7 + $0x3c] sm:$0xf] %v480
    %545 = vst [vmem:[#allocation7 + $0x40] sm:$0xf] %v481
    %546 = vst [vmem:[#allocation7 + $0x44] sm:$0xf] %v482
    %547 = vst [vmem:[#allocation7 + $0x48] sm:$0xf] %v483
    %548 = vst [vmem:[#allocation7 + $0x4c] sm:$0xf] %v484
    %549 = vst [vmem:[#allocation7 + $0x50] sm:$0xf] %v485
    %550 = vst [vmem:[#allocation7 + $0x54] sm:$0xf] %v486
    %551 = vst [vmem:[#allocation7 + $0x58] sm:$0xf] %v487
    %552 = vst [vmem:[#allocation7 + $0x5c] sm:$0xf] %v488
    %553 = vst [vmem:[#allocation7 + $0x60] sm:$0xf] %v489
    %554 = vst [vmem:[#allocation7 + $0x64] sm:$0xf] %v490
    %555 = vst [vmem:[#allocation7 + $0x68] sm:$0xf] %v491
    %556 = vst [vmem:[#allocation7 + $0x6c] sm:$0xf] %v492
    %557 = vst [vmem:[#allocation7 + $0x70] sm:$0xf] %v493
    %558 = vst [vmem:[#allocation7 + $0x74] sm:$0xf] %v494
    %559 = vst [vmem:[#allocation7 + $0x78] sm:$0xf] %v495
    %560 = vst [vmem:[#allocation7 + $0x7c] sm:$0xf] %v496
    %v561 = vmul.f32 %v275, %v275
    %v562 = vmul.f32 %v278, %v278
    %v563 = vmul.f32 %v283, %v283
    %v564 = vmul.f32 %v286, %v286
    %v565 = vmul.f32 %v291, %v291
    %v566 = vmul.f32 %v294, %v294
    %v567 = vmul.f32 %v299, %v299
    %v568 = vmul.f32 %v302, %v302
    %v569 = vmul.f32 %v307, %v307
    %v570 = vmul.f32 %v310, %v310
    %v571 = vmul.f32 %v315, %v315
    %v572 = vmul.f32 %v318, %v318
    %v573 = vmul.f32 %v323, %v323
    %v574 = vmul.f32 %v326, %v326
    %v575 = vmul.f32 %v331, %v331
    %v576 = vmul.f32 %v334, %v334
    %v577 = vmul.f32 %v339, %v339
    %v578 = vmul.f32 %v342, %v342
    %v579 = vmul.f32 %v347, %v347
    %v580 = vmul.f32 %v350, %v350
    %v581 = vmul.f32 %v355, %v355
    %v582 = vmul.f32 %v358, %v358
    %v583 = vmul.f32 %v363, %v363
    %v584 = vmul.f32 %v366, %v366
    %v585 = vmul.f32 %v371, %v371
    %v586 = vmul.f32 %v374, %v374
    %v587 = vmul.f32 %v379, %v379
    %v588 = vmul.f32 %v382, %v382
    %v589 = vmul.f32 %v387, %v387
    %v590 = vmul.f32 %v390, %v390
    %v591 = vmul.f32 %v395, %v395
    %v592 = vmul.f32 %v398, %v398
    %593 = vadd.xlane.f32.xlu0 %v561
    %v594 = vpop.xlane.xlu0 %593
    %595 = vadd.xlane.f32.xlu0 %v562
    %v596 = vpop.xlane.xlu0 %595
    %597 = vadd.xlane.f32.xlu0 %v563
    %v598 = vpop.xlane.xlu0 %597
    %599 = vadd.xlane.f32.xlu0 %v564
    %v600 = vpop.xlane.xlu0 %599
    %601 = vadd.xlane.f32.xlu0 %v565
    %v602 = vpop.xlane.xlu0 %601
    %603 = vadd.xlane.f32.xlu0 %v566
    %v604 = vpop.xlane.xlu0 %603
    %605 = vadd.xlane.f32.xlu0 %v567
    %v606 = vpop.xlane.xlu0 %605
    %607 = vadd.xlane.f32.xlu0 %v568
    %v608 = vpop.xlane.xlu0 %607
    %609 = vadd.xlane.f32.xlu0 %v569
    %v610 = vpop.xlane.xlu0 %609
    %611 = vadd.xlane.f32.xlu0 %v570
    %v612 = vpop.xlane.xlu0 %611
    %613 = vadd.xlane.f32.xlu0 %v571
    %v614 = vpop.xlane.xlu0 %613
    %615 = vadd.xlane.f32.xlu0 %v572
    %v616 = vpop.xlane.xlu0 %615
    %617 = vadd.xlane.f32.xlu0 %v573
    %v618 = vpop.xlane.xlu0 %617
    %619 = vadd.xlane.f32.xlu0 %v574
    %v620 = vpop.xlane.xlu0 %619
    %621 = vadd.xlane.f32.xlu0 %v575
    %v622 = vpop.xlane.xlu0 %621
    %623 = vadd.xlane.f32.xlu0 %v576
    %v624 = vpop.xlane.xlu0 %623
    %625 = vadd.xlane.f32.xlu0 %v577
    %v626 = vpop.xlane.xlu0 %625
    %627 = vadd.xlane.f32.xlu0 %v578
    %v628 = vpop.xlane.xlu0 %627
    %629 = vadd.xlane.f32.xlu0 %v579
    %v630 = vpop.xlane.xlu0 %629
    %631 = vadd.xlane.f32.xlu0 %v580
    %v632 = vpop.xlane.xlu0 %631
    %633 = vadd.xlane.f32.xlu0 %v581
    %v634 = vpop.xlane.xlu0 %633
    %635 = vadd.xlane.f32.xlu0 %v582
    %v636 = vpop.xlane.xlu0 %635
    %637 = vadd.xlane.f32.xlu0 %v583
    %v638 = vpop.xlane.xlu0 %637
    %639 = vadd.xlane.f32.xlu0 %v584
    %v640 = vpop.xlane.xlu0 %639
    %641 = vadd.xlane.f32.xlu0 %v585
    %v642 = vpop.xlane.xlu0 %641
    %643 = vadd.xlane.f32.xlu0 %v586
    %v644 = vpop.xlane.xlu0 %643
    %645 = vadd.xlane.f32.xlu0 %v587
    %v646 = vpop.xlane.xlu0 %645
    %647 = vadd.xlane.f32.xlu0 %v588
    %v648 = vpop.xlane.xlu0 %647
    %649 = vadd.xlane.f32.xlu0 %v589
    %v650 = vpop.xlane.xlu0 %649
    %651 = vadd.xlane.f32.xlu0 %v590
    %v652 = vpop.xlane.xlu0 %651
    %653 = vadd.xlane.f32.xlu0 %v591
    %v654 = vpop.xlane.xlu0 %653
    %655 = vadd.xlane.f32.xlu0 %v592
    %v656 = vpop.xlane.xlu0 %655
    %vm657 = vcmask 7168
    %658 = vst.msk [vmem:[%s5] sm:$0xff] %vm657, %v594
    %659 = vst.msk [vmem:[%s5 + $0x8] sm:$0xff] %vm657, %v596
    %660 = vst.msk [vmem:[%s5 + $0x10] sm:$0xff] %vm657, %v598
    %661 = vst.msk [vmem:[%s5 + $0x18] sm:$0xff] %vm657, %v600
    %662 = vst.msk [vmem:[%s5 + $0x20] sm:$0xff] %vm657, %v602
    %663 = vst.msk [vmem:[%s5 + $0x28] sm:$0xff] %vm657, %v604
    %664 = vst.msk [vmem:[%s5 + $0x30] sm:$0xff] %vm657, %v606
    %665 = vst.msk [vmem:[%s5 + $0x38] sm:$0xff] %vm657, %v608
    %666 = vst.msk [vmem:[%s5 + $0x40] sm:$0xff] %vm657, %v610
    %667 = vst.msk [vmem:[%s5 + $0x48] sm:$0xff] %vm657, %v612
    %668 = vst.msk [vmem:[%s5 + $0x50] sm:$0xff] %vm657, %v614
    %669 = vst.msk [vmem:[%s5 + $0x58] sm:$0xff] %vm657, %v616
    %670 = vst.msk [vmem:[%s5 + $0x60] sm:$0xff] %vm657, %v618
    %671 = vst.msk [vmem:[%s5 + $0x68] sm:$0xff] %vm657, %v620
    %672 = vst.msk [vmem:[%s5 + $0x70] sm:$0xff] %vm657, %v622
    %673 = vst.msk [vmem:[%s5 + $0x78] sm:$0xff] %vm657, %v624
    %674 = vst.msk [vmem:[%s5 + $0x80] sm:$0xff] %vm657, %v626
    %675 = vst.msk [vmem:[%s5 + $0x88] sm:$0xff] %vm657, %v628
    %676 = vst.msk [vmem:[%s5 + $0x90] sm:$0xff] %vm657, %v630
    %677 = vst.msk [vmem:[%s5 + $0x98] sm:$0xff] %vm657, %v632
    %678 = vst.msk [vmem:[%s5 + $0xa0] sm:$0xff] %vm657, %v634
    %679 = vst.msk [vmem:[%s5 + $0xa8] sm:$0xff] %vm657, %v636
    %680 = vst.msk [vmem:[%s5 + $0xb0] sm:$0xff] %vm657, %v638
    %681 = vst.msk [vmem:[%s5 + $0xb8] sm:$0xff] %vm657, %v640
    %682 = vst.msk [vmem:[%s5 + $0xc0] sm:$0xff] %vm657, %v642
    %683 = vst.msk [vmem:[%s5 + $0xc8] sm:$0xff] %vm657, %v644
    %684 = vst.msk [vmem:[%s5 + $0xd0] sm:$0xff] %vm657, %v646
    %685 = vst.msk [vmem:[%s5 + $0xd8] sm:$0xff] %vm657, %v648
    %686 = vst.msk [vmem:[%s5 + $0xe0] sm:$0xff] %vm657, %v650
    %687 = vst.msk [vmem:[%s5 + $0xe8] sm:$0xff] %vm657, %v652
    %688 = vst.msk [vmem:[%s5 + $0xf0] sm:$0xff] %vm657, %v654
    %689 = vst.msk [vmem:[%s5 + $0xf8] sm:$0xff] %vm657, %v656
    %v690 = vld [vmem:[%s2] sm:$0x3]
    %v691 = vlaneseq
    %v692 = vshrl.u32 %v691, 7
    %v693 = vadd.s32 %v692, 8
    %v694 = vadd.s32 %v692, 16
    %v695 = vadd.s32 %v692, 24
    %v696 = vadd.s32 %v692, 32
    %v697 = vadd.s32 %v692, 40
    %v698 = vadd.s32 %v692, 48
    %v699 = vadd.s32 %v692, 56
    %v700 = vadd.s32 %v692, 64
    %v701 = vadd.s32 %v692, 72
    %v702 = vadd.s32 %v692, 80
    %v703 = vadd.s32 %v692, 88
    %v704 = vadd.s32 %v692, 96
    %v705 = vadd.s32 %v692, 104
    %v706 = vadd.s32 %v692, 112
    %v707 = vadd.s32 %v692, 120
    %v708 = vlaneseq
    %v709 = vshrl.u32 %v708, 7
    %v710 = vsub.s32 0, %v709
    %v711 = vrot.slane %v690, %v710
    %v712 = vlaneseq
    %v713 = vshrl.u32 %v712, 7
    %v714 = vsub.s32 1, %v713
    %v715 = vrot.slane %v690, %v714
    %vm716 = vcmp.eq.s32.totalorder %v692, %v711
    %vm717 = vcmp.eq.s32.totalorder %v692, %v715
    %vm718 = vcmp.eq.s32.totalorder %v693, %v711
    %vm719 = vcmp.eq.s32.totalorder %v693, %v715
    %vm720 = vcmp.eq.s32.totalorder %v694, %v711
    %vm721 = vcmp.eq.s32.totalorder %v694, %v715
    %vm722 = vcmp.eq.s32.totalorder %v695, %v711
    %vm723 = vcmp.eq.s32.totalorder %v695, %v715
    %vm724 = vcmp.eq.s32.totalorder %v696, %v711
    %vm725 = vcmp.eq.s32.totalorder %v696, %v715
    %vm726 = vcmp.eq.s32.totalorder %v697, %v711
    %vm727 = vcmp.eq.s32.totalorder %v697, %v715
    %vm728 = vcmp.eq.s32.totalorder %v698, %v711
    %vm729 = vcmp.eq.s32.totalorder %v698, %v715
    %vm730 = vcmp.eq.s32.totalorder %v699, %v711
    %vm731 = vcmp.eq.s32.totalorder %v699, %v715
    %vm732 = vcmp.eq.s32.totalorder %v700, %v711
    %vm733 = vcmp.eq.s32.totalorder %v700, %v715
    %vm734 = vcmp.eq.s32.totalorder %v701, %v711
    %vm735 = vcmp.eq.s32.totalorder %v701, %v715
    %vm736 = vcmp.eq.s32.totalorder %v702, %v711
    %vm737 = vcmp.eq.s32.totalorder %v702, %v715
    %vm738 = vcmp.eq.s32.totalorder %v703, %v711
    %vm739 = vcmp.eq.s32.totalorder %v703, %v715
    %vm740 = vcmp.eq.s32.totalorder %v704, %v711
    %vm741 = vcmp.eq.s32.totalorder %v704, %v715
    %vm742 = vcmp.eq.s32.totalorder %v705, %v711
    %vm743 = vcmp.eq.s32.totalorder %v705, %v715
    %vm744 = vcmp.eq.s32.totalorder %v706, %v711
    %vm745 = vcmp.eq.s32.totalorder %v706, %v715
    %vm746 = vcmp.eq.s32.totalorder %v707, %v711
    %vm747 = vcmp.eq.s32.totalorder %v707, %v715
    %v748 = vsel %vm716, 1, 0
    %v749 = vsel %vm717, 1, 0
    %v750 = vsel %vm718, 1, 0
    %v751 = vsel %vm719, 1, 0
    %v752 = vsel %vm720, 1, 0
    %v753 = vsel %vm721, 1, 0
    %v754 = vsel %vm722, 1, 0
    %v755 = vsel %vm723, 1, 0
    %v756 = vsel %vm724, 1, 0
    %v757 = vsel %vm725, 1, 0
    %v758 = vsel %vm726, 1, 0
    %v759 = vsel %vm727, 1, 0
    %v760 = vsel %vm728, 1, 0
    %v761 = vsel %vm729, 1, 0
    %v762 = vsel %vm730, 1, 0
    %v763 = vsel %vm731, 1, 0
    %v764 = vsel %vm732, 1, 0
    %v765 = vsel %vm733, 1, 0
    %v766 = vsel %vm734, 1, 0
    %v767 = vsel %vm735, 1, 0
    %v768 = vsel %vm736, 1, 0
    %v769 = vsel %vm737, 1, 0
    %v770 = vsel %vm738, 1, 0
    %v771 = vsel %vm739, 1, 0
    %v772 = vsel %vm740, 1, 0
    %v773 = vsel %vm741, 1, 0
    %v774 = vsel %vm742, 1, 0
    %v775 = vsel %vm743, 1, 0
    %v776 = vsel %vm744, 1, 0
    %v777 = vsel %vm745, 1, 0
    %v778 = vsel %vm746, 1, 0
    %v779 = vsel %vm747, 1, 0
    %v780 = vcvt.s32.f32 %v748
    %v781 = vcvt.s32.f32 %v749
    %v782 = vcvt.s32.f32 %v750
    %v783 = vcvt.s32.f32 %v751
    %v784 = vcvt.s32.f32 %v752
    %v785 = vcvt.s32.f32 %v753
    %v786 = vcvt.s32.f32 %v754
    %v787 = vcvt.s32.f32 %v755
    %v788 = vcvt.s32.f32 %v756
    %v789 = vcvt.s32.f32 %v757
    %v790 = vcvt.s32.f32 %v758
    %v791 = vcvt.s32.f32 %v759
    %v792 = vcvt.s32.f32 %v760
    %v793 = vcvt.s32.f32 %v761
    %v794 = vcvt.s32.f32 %v762
    %v795 = vcvt.s32.f32 %v763
    %v796 = vcvt.s32.f32 %v764
    %v797 = vcvt.s32.f32 %v765
    %v798 = vcvt.s32.f32 %v766
    %v799 = vcvt.s32.f32 %v767
    %v800 = vcvt.s32.f32 %v768
    %v801 = vcvt.s32.f32 %v769
    %v802 = vcvt.s32.f32 %v770
    %v803 = vcvt.s32.f32 %v771
    %v804 = vcvt.s32.f32 %v772
    %v805 = vcvt.s32.f32 %v773
    %v806 = vcvt.s32.f32 %v774
    %v807 = vcvt.s32.f32 %v775
    %v808 = vcvt.s32.f32 %v776
    %v809 = vcvt.s32.f32 %v777
    %v810 = vcvt.s32.f32 %v778
    %v811 = vcvt.s32.f32 %v779
    %v812 = vpack.c.bf16 %v782, %v780
    %v813 = vpack.c.bf16 %v783, %v781
    %v814 = vpack.c.bf16 %v786, %v784
    %v815 = vpack.c.bf16 %v787, %v785
    %v816 = vpack.c.bf16 %v790, %v788
    %v817 = vpack.c.bf16 %v791, %v789
    %v818 = vpack.c.bf16 %v794, %v792
    %v819 = vpack.c.bf16 %v795, %v793
    %v820 = vpack.c.bf16 %v798, %v796
    %v821 = vpack.c.bf16 %v799, %v797
    %v822 = vpack.c.bf16 %v802, %v800
    %v823 = vpack.c.bf16 %v803, %v801
    %v824 = vpack.c.bf16 %v806, %v804
    %v825 = vpack.c.bf16 %v807, %v805
    %v826 = vpack.c.bf16 %v810, %v808
    %v827 = vpack.c.bf16 %v811, %v809
    %828 = vmatprep.subr.bf16.mxu0 0
    %829 = vmatpush1.bf16.msra.mxu0 %v408
    %830 = vmatprep.subr.bf16.mxu0 0
    %831 = vmatpush1.bf16.msra.mxu0 %v407
    %832 = vmatprep.subr.bf16.mxu0 0
    %833 = vmatpush1.bf16.msra.mxu0 %v406
    %834 = vmatprep.subr.bf16.mxu0 0
    %835 = vmatpush1.bf16.msra.mxu0 %v405
    %836 = vmatprep.subr.bf16.mxu0 0
    %837 = vmatpush1.bf16.msra.mxu0 %v404
    %838 = vmatprep.subr.bf16.mxu0 0
    %839 = vmatpush1.bf16.msra.mxu0 %v403
    %840 = vmatprep.subr.bf16.mxu0 0
    %841 = vmatpush1.bf16.msra.mxu0 %v402
    %842 = vmatprep.subr.bf16.mxu0 0
    %843 = vmatpush1.bf16.msra.mxu0 %v401
    %844 = vmatprep.subr.bf16.mxu0 0
    %845 = vmatpush2.bf16.msra.mxu0 %v416
    %846 = vmatprep.subr.bf16.mxu0 0
    %847 = vmatpush2.bf16.msra.mxu0 %v415
    %848 = vmatprep.subr.bf16.mxu0 0
    %849 = vmatpush2.bf16.msra.mxu0 %v414
    %850 = vmatprep.subr.bf16.mxu0 0
    %851 = vmatpush2.bf16.msra.mxu0 %v413
    %852 = vmatprep.subr.bf16.mxu0 0
    %853 = vmatpush2.bf16.msra.mxu0 %v412
    %854 = vmatprep.subr.bf16.mxu0 0
    %855 = vmatpush2.bf16.msra.mxu0 %v411
    %856 = vmatprep.subr.bf16.mxu0 0
    %857 = vmatpush2.bf16.msra.mxu0 %v410
    %858 = vmatprep.subr.bf16.mxu0 0
    %859 = vmatpush2.bf16.msra.mxu0 %v409
    %860 = vmatprep.mubr.bf16.mxu0 %v813
    %861 = vmatmul.mubr.bf16.gmra.mxu0 %v812
    %v862 = vpop.f32.mrf.mxu0
    %v863 = vadd.f32 0.0, %v862
    %v864 = vpop.f32.mrf.mxu0
    %v865 = vpop.f32.mrf.mxu0
    %v866 = vadd.f32 0.0, %v865
    %v867 = vpop.f32.mrf.mxu0
    %868 = vmatprep.mubr.bf16.mxu0 %v815
    %869 = vmatmul.mubr.bf16.gmra.mxu0 %v814
    %v870 = vpop.f32.mrf.mxu0
    %v871 = vadd.f32 0.0, %v870
    %v872 = vpop.f32.mrf.mxu0
    %v873 = vpop.f32.mrf.mxu0
    %v874 = vadd.f32 0.0, %v873
    %v875 = vpop.f32.mrf.mxu0
    %876 = vmatprep.mubr.bf16.mxu0 %v817
    %877 = vmatmul.mubr.bf16.gmra.mxu0 %v816
    %v878 = vpop.f32.mrf.mxu0
    %v879 = vadd.f32 0.0, %v878
    %v880 = vpop.f32.mrf.mxu0
    %v881 = vpop.f32.mrf.mxu0
    %v882 = vadd.f32 0.0, %v881
    %v883 = vpop.f32.mrf.mxu0
    %884 = vmatprep.mubr.bf16.mxu0 %v819
    %885 = vmatmul.mubr.bf16.gmra.mxu0 %v818
    %v886 = vpop.f32.mrf.mxu0
    %v887 = vadd.f32 0.0, %v886
    %v888 = vpop.f32.mrf.mxu0
    %v889 = vpop.f32.mrf.mxu0
    %v890 = vadd.f32 0.0, %v889
    %v891 = vpop.f32.mrf.mxu0
    %892 = vmatprep.mubr.bf16.mxu0 %v821
    %893 = vmatmul.mubr.bf16.gmra.mxu0 %v820
    %v894 = vpop.f32.mrf.mxu0
    %v895 = vadd.f32 0.0, %v894
    %v896 = vpop.f32.mrf.mxu0
    %v897 = vpop.f32.mrf.mxu0
    %v898 = vadd.f32 0.0, %v897
    %v899 = vpop.f32.mrf.mxu0
    %900 = vmatprep.mubr.bf16.mxu0 %v823
    %901 = vmatmul.mubr.bf16.gmra.mxu0 %v822
    %v902 = vpop.f32.mrf.mxu0
    %v903 = vadd.f32 0.0, %v902
    %v904 = vpop.f32.mrf.mxu0
    %v905 = vpop.f32.mrf.mxu0
    %v906 = vadd.f32 0.0, %v905
    %v907 = vpop.f32.mrf.mxu0
    %908 = vmatprep.mubr.bf16.mxu0 %v825
    %909 = vmatmul.mubr.bf16.gmra.mxu0 %v824
    %v910 = vpop.f32.mrf.mxu0
    %v911 = vadd.f32 0.0, %v910
    %v912 = vpop.f32.mrf.mxu0
    %v913 = vpop.f32.mrf.mxu0
    %v914 = vadd.f32 0.0, %v913
    %v915 = vpop.f32.mrf.mxu0
    %916 = vmatprep.mubr.bf16.mxu0 %v827
    %917 = vmatmul.mubr.bf16.gmra.mxu0 %v826
    %v918 = vpop.f32.mrf.mxu0
    %v919 = vadd.f32 0.0, %v918
    %v920 = vpop.f32.mrf.mxu0
    %v921 = vpop.f32.mrf.mxu0
    %v922 = vadd.f32 0.0, %v921
    %v923 = vpop.f32.mrf.mxu0
    %924 = vdwg.mxu0
    %925 = vst [vmem:[#allocation8] sm:$0xff] %v863
    %926 = vst [vmem:[#allocation8 + $0x8] sm:$0xff] %v866
    %927 = vst [vmem:[#allocation8 + $0x10] sm:$0xff] %v871
    %928 = vst [vmem:[#allocation8 + $0x18] sm:$0xff] %v874
    %929 = vst [vmem:[#allocation8 + $0x20] sm:$0xff] %v879
    %930 = vst [vmem:[#allocation8 + $0x28] sm:$0xff] %v882
    %931 = vst [vmem:[#allocation8 + $0x30] sm:$0xff] %v887
    %932 = vst [vmem:[#allocation8 + $0x38] sm:$0xff] %v890
    %933 = vst [vmem:[#allocation8 + $0x40] sm:$0xff] %v895
    %934 = vst [vmem:[#allocation8 + $0x48] sm:$0xff] %v898
    %935 = vst [vmem:[#allocation8 + $0x50] sm:$0xff] %v903
    %936 = vst [vmem:[#allocation8 + $0x58] sm:$0xff] %v906
    %937 = vst [vmem:[#allocation8 + $0x60] sm:$0xff] %v911
    %938 = vst [vmem:[#allocation8 + $0x68] sm:$0xff] %v914
    %939 = vst [vmem:[#allocation8 + $0x70] sm:$0xff] %v919
    %940 = vst [vmem:[#allocation8 + $0x78] sm:$0xff] %v922
    // Predicated region
    $region22: #{tpu_custom_call.1} parent=1 // pred_check
      _
    $region23: #{tpu_custom_call.1} parent=1 // pred_check_branch
      %942 = sbr.rel (0) target = $region25
    $region24: #{tpu_custom_call.1} parent=1 // pred_region
      %s944 = ssub.s32 2048, 2048
      %945 = vsyncadd [#allocation4], %s944
      %s946 = sshll.u32 [#allocation7], 4
      %s947 = int_to_ptr.vmem [resolvable:$true] %s946
      %952 = dma.vmem_to_hbm [thread:$0]  %s947, 2048, %s3, [#allocation4], 64, 64, 4
    $region25: #{tpu_custom_call.1} parent=1 // pred_fallthru
      _
    // Predicated region
    $region26: #{tpu_custom_call.1} parent=1 // pred_check
      _
    $region27: #{tpu_custom_call.1} parent=1 // pred_check_branch
      %954 = sbr.rel (0) target = $region29
    $region28: #{tpu_custom_call.1} parent=1 // pred_region
      %s956 = ssub.s32 2048, 2048
      %957 = vsyncadd [#allocation9], %s956
      %s958 = sshll.u32 [#allocation8], 4
      %s959 = int_to_ptr.vmem [resolvable:$true] %s958
      %964 = dma.vmem_to_hbm [thread:$0]  %s959, 2048, %s4, [#allocation9], 128, 128, 8
    $region29: #{tpu_custom_call.1} parent=1 // pred_fallthru
      _
    // Predicated region
    $region30: #{tpu_custom_call.1} parent=1 // pred_check
      _
    $region31: #{tpu_custom_call.1} parent=1 // pred_check_branch
      %966 = sbr.rel (0) target = $region33
    $region32: #{tpu_custom_call.1} parent=1 // pred_region
      _
    $region33: #{tpu_custom_call.1} parent=1 // pred_fallthru
      _
    // Predicated region
    $region34: #{tpu_custom_call.1} parent=1 // pred_check
      _
    $region35: #{tpu_custom_call.1} parent=1 // pred_check_branch
      %968 = sbr.rel (0) target = $region37
    $region36: #{tpu_custom_call.1} parent=1 // pred_region
      %969 = dma.done [#allocation4], 2048
    $region37: #{tpu_custom_call.1} parent=1 // pred_fallthru
      _
    // Predicated region
    $region38: #{tpu_custom_call.1} parent=1 // pred_check
      _
    $region39: #{tpu_custom_call.1} parent=1 // pred_check_branch
      %971 = sbr.rel (0) target = $region41
    $region40: #{tpu_custom_call.1} parent=1 // pred_region
      %972 = dma.done [#allocation9], 2048
    $region41: #{tpu_custom_call.1} parent=1 // pred_fallthru
      _
    // Predicated region
    $region42: #{tpu_custom_call.1} parent=1 // pred_check
      _
    $region43: #{tpu_custom_call.1} parent=1 // pred_check_branch
      %974 = sbr.rel (0) target = $region45
    $region44: #{tpu_custom_call.1} parent=1 // pred_region
      _
    $region45: #{tpu_custom_call.1} parent=1 // pred_fallthru
      _
    %975 = vsyncpa [#allocation3], 1
    %976 = vsyncpa [#allocation6], 1
    %977 = vsyncpa [#allocation4], 1
    %978 = vsyncpa [#allocation9], 1

</llo_original>
